<compile_context>
chip_gen: v5e
topology: v5e:2x2
jax: 0.10.0
libtpu: 0.0.40
codegen_flags: <defaults>
</compile_context>

<pallas_src>
import functools

import jax
import jax.numpy as jnp
from jax.experimental import pallas as pl
from jax.experimental.pallas import tpu as pltpu

_VMEM = pl.BlockSpec(memory_space=pltpu.MemorySpace.VMEM)
_OUT_PAD = 128          # lane-dense output / head slab width
_LN_EPS = 1e-5          # torch nn.LayerNorm default


# ----------------------------- packed layouts --------------------------------

def _align16(n):
    return -(-n // 16) * 16


def _weight_layout(input_dim_pad, d_model, d_ff, num_layers):
    """Row layout of the single bf16 weight slab: name -> (row_off, rows, cols)."""
    layout = {}
    off = 0

    def add(name, rows, cols):
        nonlocal off
        layout[name] = (off, rows, cols)
        off = _align16(off + rows)

    add("emb", input_dim_pad, d_model)
    for l in range(num_layers):
        add(f"qkv{l}", d_model, 3 * d_model)
        add(f"wo{l}", d_model, d_model)
        add(f"w1{l}", d_model, d_ff)
        add(f"w2{l}", d_ff, d_model)
    add("head", d_model, _OUT_PAD)
    return layout, _align16(off)


def _const_layout(num_layers):
    """Row layout of the single f32 bias/LN slab: name -> row index."""
    names = ["emb_b", "ln_g", "ln_b"]
    for l in range(num_layers):
        names += [f"bqkv{l}", f"bo{l}", f"b1{l}", f"b2{l}",
                  f"ln1_g{l}", f"ln1_b{l}", f"ln2_g{l}", f"ln2_b{l}"]
    names += ["head_b"]
    return {n: i for i, n in enumerate(names)}, len(names)


# ------------------------------ fused kernel ---------------------------------

def _fused_kernel(x_ref, w_ref, c_ref, out_ref, *, d_model, num_heads, head_dim,
                  d_ff, num_layers, input_dim_pad, n_softmax, n_attr):
    """Embedding -> LN -> num_layers x (MHA + FFN, post-norm) -> fused heads."""
    f32 = jnp.float32
    bf16 = jnp.bfloat16
    wl, _ = _weight_layout(input_dim_pad, d_model, d_ff, num_layers)
    cl, _ = _const_layout(num_layers)

    def wmat(name):                      # bf16 weight block
        off, r, c = wl[name]
        return w_ref[off:off + r, 0:c]

    def crow(name, n):                   # f32 (1, n) bias / LN row
        i = cl[name]
        return c_ref[i:i + 1, 0:n]

    def layer_norm(v, gname, bname):
        mean = jnp.mean(v, axis=-1, keepdims=True)
        cent = v - mean
        var = jnp.mean(cent * cent, axis=-1, keepdims=True)
        return (cent * jax.lax.rsqrt(var + _LN_EPS)
                * crow(gname, d_model) + crow(bname, d_model))

    # Embedding (dropout = identity at eval) + LayerNorm.
    h = jnp.dot(x_ref[...].astype(bf16), wmat("emb"),
                preferred_element_type=f32) + crow("emb_b", d_model)
    h = layer_norm(h, "ln_g", "ln_b")

    for l in range(num_layers):
        # --- multi-head self-attention: fused QKV projection (scale folded) ---
        hb = h.astype(bf16)
        qkv = jnp.dot(hb, wmat(f"qkv{l}"), preferred_element_type=f32) \
            + crow(f"bqkv{l}", 3 * d_model)
        qkv = qkv.astype(bf16)

        heads_out = []
        for hd in range(num_heads):
            q = qkv[:, hd * head_dim:(hd + 1) * head_dim]
            k = qkv[:, d_model + hd * head_dim:d_model + (hd + 1) * head_dim]
            v = qkv[:, 2 * d_model + hd * head_dim:2 * d_model + (hd + 1) * head_dim]
            # scores = q @ k^T without materializing a transpose.
            s = jax.lax.dot_general(q, k, (((1,), (1,)), ((), ())),
                                    preferred_element_type=f32)
            s = s - jnp.max(s, axis=-1, keepdims=True)
            p = jnp.exp(s)
            p = p * pl.reciprocal(jnp.sum(p, axis=-1, keepdims=True), approx=True)
            heads_out.append(jnp.dot(p.astype(bf16), v, preferred_element_type=f32))

        # Lane-concat head outputs -> single output-projection matmul.
        o = jnp.concatenate(heads_out, axis=1)                     # (S, d_model) f32
        attn = jnp.dot(o.astype(bf16), wmat(f"wo{l}"),
                       preferred_element_type=f32) + crow(f"bo{l}", d_model)
        h = layer_norm(h + attn, f"ln1_g{l}", f"ln1_b{l}")

        # --- feed-forward ---
        f = jnp.dot(h.astype(bf16), wmat(f"w1{l}"),
                    preferred_element_type=f32) + crow(f"b1{l}", d_ff)
        f = jnp.maximum(f, 0.0)
        f = jnp.dot(f.astype(bf16), wmat(f"w2{l}"),
                    preferred_element_type=f32) + crow(f"b2{l}", d_model)
        h = layer_norm(h + f, f"ln2_g{l}", f"ln2_b{l}")

    # --- fused output heads, one lane-dense (S, 128) slab ---
    # lanes [0, n_softmax): person-id softmax; [n_softmax, n_softmax+n_attr): sigmoids.
    y = jnp.dot(h.astype(bf16), wmat("head"),
                preferred_element_type=f32) + crow("head_b", _OUT_PAD)
    lane = jax.lax.broadcasted_iota(jnp.int32, y.shape, 1)
    ys = jnp.where(lane < n_softmax, y, -1e30)
    ys = ys - jnp.max(ys, axis=-1, keepdims=True)
    e = jnp.exp(ys)
    sm = e / jnp.sum(e, axis=-1, keepdims=True)      # exact divide in final head
    sg = jax.nn.sigmoid(y)
    out_ref[...] = jnp.where(lane < n_softmax, sm, sg)


# --------------------------- forward wrapper (1 launch) -----------------------

@functools.partial(
    jax.jit,
    static_argnames=("d_model", "num_heads", "head_dim", "d_ff", "num_layers",
                     "input_dim", "input_dim_pad", "n_softmax", "n_attr",
                     "output_type"))
def gated_transformer_forward(x, w_all, consts, *, d_model, num_heads, head_dim,
                              d_ff, num_layers, input_dim, input_dim_pad,
                              n_softmax, n_attr, output_type):
    seq_len = x.shape[0]
    x_pad = jnp.zeros((seq_len, input_dim_pad), jnp.float32)
    x_pad = x_pad.at[:, :input_dim].set(x)

    kernel = functools.partial(
        _fused_kernel, d_model=d_model, num_heads=num_heads, head_dim=head_dim,
        d_ff=d_ff, num_layers=num_layers, input_dim_pad=input_dim_pad,
        n_softmax=n_softmax, n_attr=n_attr)

    out = pl.pallas_call(
        kernel,
        out_shape=jax.ShapeDtypeStruct((seq_len, _OUT_PAD), jnp.float32),
        in_specs=[_VMEM, _VMEM, _VMEM],
        out_specs=_VMEM,
    )(x_pad, w_all, consts)

    person = out[:, :n_softmax]
    a = n_softmax
    attrs = (out[:, a:a + 2], out[:, a + 2:a + 4],
             out[:, a + 4:a + 6], out[:, a + 6:a + 9])
    if output_type == "softmax":
        return person
    if output_type == "attribute":
        return attrs
    return person, attrs            # 'both': one launch serves both branches


# --------------------------- parameter construction ---------------------------

def _lin_params(key, fan_in, fan_out):
    """Deterministic linear params; weight stored pre-transposed as (in, out)."""
    kw, kb = jax.random.split(key)
    bound = 1.0 / (fan_in ** 0.5)
    w = jax.random.uniform(kw, (fan_in, fan_out), jnp.float32, -bound, bound)
    b = jax.random.uniform(kb, (1, fan_out), jnp.float32, -bound, bound)
    return w, b


def init_params(key, input_dim, d_model, num_heads, d_ff, num_layers,
                num_classes):
    keys = jax.random.split(key, 8 + 8 * num_layers)
    it = iter(keys)
    params = {}
    params["emb_w"], params["emb_b"] = _lin_params(next(it), input_dim, d_model)
    params["ln_g"] = jnp.ones((1, d_model), jnp.float32)
    params["ln_b"] = jnp.zeros((1, d_model), jnp.float32)
    layers = []
    for _ in range(num_layers):
        lp = {}
        lp["wq"], lp["bq"] = _lin_params(next(it), d_model, d_model)
        lp["wk"], lp["bk"] = _lin_params(next(it), d_model, d_model)
        lp["wv"], lp["bv"] = _lin_params(next(it), d_model, d_model)
        lp["wo"], lp["bo"] = _lin_params(next(it), d_model, d_model)
        lp["w1"], lp["b1"] = _lin_params(next(it), d_model, d_ff)
        lp["w2"], lp["b2"] = _lin_params(next(it), d_ff, d_model)
        lp["ln1_g"] = jnp.ones((1, d_model), jnp.float32)
        lp["ln1_b"] = jnp.zeros((1, d_model), jnp.float32)
        lp["ln2_g"] = jnp.ones((1, d_model), jnp.float32)
        lp["ln2_b"] = jnp.zeros((1, d_model), jnp.float32)
        layers.append(lp)
    params["layers"] = layers
    params["pid_w"], params["pid_b"] = _lin_params(next(it), d_model, num_classes)
    params["age_w"], params["age_b"] = _lin_params(next(it), d_model, 2)
    params["hgt_w"], params["hgt_b"] = _lin_params(next(it), d_model, 2)
    params["wgt_w"], params["wgt_b"] = _lin_params(next(it), d_model, 2)
    params["gen_w"], params["gen_b"] = _lin_params(next(it), d_model, 3)
    return params


def pack_params(params, num_heads):
    """Pack everything into one bf16 weight slab + one f32 bias/LN slab.

    Host-side, once: fuse Q/K/V weights per layer, fold 1/sqrt(dh) into Wq/bq,
    fuse both classifier heads into a (d_model, 128) lane-dense block."""
    emb_w = params["emb_w"]
    input_dim, d_model = emb_w.shape
    layers = params["layers"]
    num_layers = len(layers)
    d_ff = layers[0]["w1"].shape[1]
    head_dim = d_model // num_heads
    input_dim_pad = ((input_dim + 7) // 8) * 8
    scale = 1.0 / float(head_dim) ** 0.5

    wl, wrows = _weight_layout(input_dim_pad, d_model, d_ff, num_layers)
    cl, crows = _const_layout(num_layers)
    crows_pad = ((crows + 7) // 8) * 8

    w = jnp.zeros((wrows, _OUT_PAD), jnp.float32)
    c = jnp.zeros((crows_pad, _OUT_PAD), jnp.float32)

    def setw(name, mat):
        nonlocal w
        off, _, _ = wl[name]
        w = w.at[off:off + mat.shape[0], :mat.shape[1]].set(mat)

    def setc(name, vec):
        nonlocal c
        i = cl[name]
        c = c.at[i:i + 1, :vec.shape[1]].set(vec)

    setw("emb", emb_w)
    setc("emb_b", params["emb_b"])
    setc("ln_g", params["ln_g"])
    setc("ln_b", params["ln_b"])

    for l, lp in enumerate(layers):
        wqkv = jnp.concatenate([lp["wq"] * scale, lp["wk"], lp["wv"]], axis=1)
        bqkv = jnp.concatenate([lp["bq"] * scale, lp["bk"], lp["bv"]], axis=1)
        setw(f"qkv{l}", wqkv)
        setc(f"bqkv{l}", bqkv)
        setw(f"wo{l}", lp["wo"])
        setc(f"bo{l}", lp["bo"])
        setw(f"w1{l}", lp["w1"])
        setc(f"b1{l}", lp["b1"])
        setw(f"w2{l}", lp["w2"])
        setc(f"b2{l}", lp["b2"])
        setc(f"ln1_g{l}", lp["ln1_g"])
        setc(f"ln1_b{l}", lp["ln1_b"])
        setc(f"ln2_g{l}", lp["ln2_g"])
        setc(f"ln2_b{l}", lp["ln2_b"])

    head_w = jnp.concatenate([params["pid_w"], params["age_w"], params["hgt_w"],
                              params["wgt_w"], params["gen_w"]], axis=1)
    head_b = jnp.concatenate([params["pid_b"], params["age_b"], params["hgt_b"],
                              params["wgt_b"], params["gen_b"]], axis=1)
    setw("head", head_w)
    setc("head_b", head_b)

    n_softmax = params["pid_w"].shape[1]
    n_attr = head_w.shape[1] - n_softmax
    cfg = dict(d_model=d_model, num_heads=num_heads, head_dim=head_dim,
               d_ff=d_ff, num_layers=num_layers, input_dim=input_dim,
               input_dim_pad=input_dim_pad, n_softmax=n_softmax, n_attr=n_attr)
    return w.astype(jnp.bfloat16), c, cfg


# ----------------------------------- main -------------------------------------

if __name__ == "__main__":
    seq_len = 8
    input_dim = 4
    d_model = 32
    num_heads = 4
    d_ff = 64
    num_layers = 2
    num_classes = 10

    key = jax.random.PRNGKey(0)
    k_x, k_p = jax.random.split(key)
    x = jax.random.normal(k_x, (seq_len, input_dim), jnp.float32)
    params = init_params(k_p, input_dim, d_model, num_heads, d_ff,
                         num_layers, num_classes)
    w_all, consts, cfg = pack_params(params, num_heads)

    # Single launch produces both config['output_type'] branches.
    person, attrs = gated_transformer_forward(
        x, w_all, consts, output_type="both", **cfg)
    (person, attrs) = jax.block_until_ready((person, attrs))

    assert person.shape == (seq_len, num_classes)
    assert bool(jnp.all(jnp.isfinite(person)))
    assert bool(jnp.allclose(jnp.sum(person, axis=-1), 1.0, atol=1e-2))
    assert attrs[0].shape == (seq_len, 2) and attrs[1].shape == (seq_len, 2)
    assert attrs[2].shape == (seq_len, 2) and attrs[3].shape == (seq_len, 3)
    assert all(bool(jnp.all(jnp.isfinite(a))) for a in attrs)

    print("KERNEL_OK")
</pallas_src>

<mosaic_0001>
module attributes {stable_mosaic.version = 11 : i64} {
  func.func @_fused_kernel(%arg0: memref<8x8xf32, #tpu.memory_space<vmem>>, %arg1: memref<368x128xbf16, #tpu.memory_space<vmem>>, %arg2: memref<24x128xf32, #tpu.memory_space<vmem>>, %arg3: memref<8x128xf32, #tpu.memory_space<vmem>>) attributes {dimension_semantics = [], scalar_prefetch = 0 : i64, scratch_operands = 0 : i64, tpu.core_type = #tpu.core_type<tc>} {
    %c0 = arith.constant 0 : index
    %c0_0 = arith.constant 0 : index
    %0 = vector.load %arg0[%c0, %c0_0] : memref<8x8xf32, #tpu.memory_space<vmem>>, vector<8x8xf32>
    %1 = arith.truncf %0 : vector<8x8xf32> to vector<8x8xbf16>
    %c0_1 = arith.constant 0 : index
    %c0_2 = arith.constant 0 : index
    %2 = vector.load %arg1[%c0_1, %c0_2] : memref<368x128xbf16, #tpu.memory_space<vmem>>, vector<8x32xbf16>
    %cst = arith.constant dense<0.000000e+00> : vector<8x32xf32>
    %3 = tpu.matmul %1, %2, %cst {dimension_numbers = #tpu.dot_dimension_numbers<[1], [0], [0], [1], [0, 0, 1, 1], [], []>} : vector<8x8xbf16>, vector<8x32xbf16>, vector<8x32xf32> -> vector<8x32xf32>
    %c0_3 = arith.constant 0 : index
    %c0_4 = arith.constant 0 : index
    %4 = vector.load %arg2[%c0_3, %c0_4] : memref<24x128xf32, #tpu.memory_space<vmem>>, vector<1x32xf32>
    %5 = vector.broadcast %4 : vector<1x32xf32> to vector<8x32xf32>
    %6 = arith.addf %3, %5 : vector<8x32xf32>
    %cst_5 = arith.constant dense<0.000000e+00> : vector<8xf32>
    %7 = vector.multi_reduction <add>, %6, %cst_5 [1] : vector<8x32xf32> to vector<8xf32>
    %8 = vector.shape_cast %7 : vector<8xf32> to vector<8x1xf32>
    %cst_6 = arith.constant 3.200000e+01 : f32
    %9 = vector.broadcast %cst_6 : f32 to vector<8x1xf32>
    %10 = arith.divf %8, %9 : vector<8x1xf32>
    %11 = vector.broadcast %10 : vector<8x1xf32> to vector<8x32xf32>
    %12 = arith.subf %6, %11 : vector<8x32xf32>
    %13 = arith.mulf %12, %12 : vector<8x32xf32>
    %cst_7 = arith.constant dense<0.000000e+00> : vector<8xf32>
    %14 = vector.multi_reduction <add>, %13, %cst_7 [1] : vector<8x32xf32> to vector<8xf32>
    %15 = vector.shape_cast %14 : vector<8xf32> to vector<8x1xf32>
    %cst_8 = arith.constant 3.200000e+01 : f32
    %16 = vector.broadcast %cst_8 : f32 to vector<8x1xf32>
    %17 = arith.divf %15, %16 : vector<8x1xf32>
    %cst_9 = arith.constant 9.99999974E-6 : f32
    %18 = vector.broadcast %cst_9 : f32 to vector<8x1xf32>
    %19 = arith.addf %17, %18 : vector<8x1xf32>
    %20 = math.rsqrt %19 : vector<8x1xf32>
    %21 = vector.broadcast %20 : vector<8x1xf32> to vector<8x32xf32>
    %22 = arith.mulf %12, %21 : vector<8x32xf32>
    %c1 = arith.constant 1 : index
    %c0_10 = arith.constant 0 : index
    %23 = vector.load %arg2[%c1, %c0_10] : memref<24x128xf32, #tpu.memory_space<vmem>>, vector<1x32xf32>
    %24 = vector.broadcast %23 : vector<1x32xf32> to vector<8x32xf32>
    %25 = arith.mulf %22, %24 : vector<8x32xf32>
    %c2 = arith.constant 2 : index
    %c0_11 = arith.constant 0 : index
    %26 = vector.load %arg2[%c2, %c0_11] : memref<24x128xf32, #tpu.memory_space<vmem>>, vector<1x32xf32>
    %27 = vector.broadcast %26 : vector<1x32xf32> to vector<8x32xf32>
    %28 = arith.addf %25, %27 : vector<8x32xf32>
    %29 = arith.truncf %28 : vector<8x32xf32> to vector<8x32xbf16>
    %c16 = arith.constant 16 : index
    %c0_12 = arith.constant 0 : index
    %30 = vector.load %arg1[%c16, %c0_12] : memref<368x128xbf16, #tpu.memory_space<vmem>>, vector<32x96xbf16>
    %cst_13 = arith.constant dense<0.000000e+00> : vector<8x96xf32>
    %31 = tpu.matmul %29, %30, %cst_13 {dimension_numbers = #tpu.dot_dimension_numbers<[1], [0], [0], [1], [0, 0, 1, 1], [], []>} : vector<8x32xbf16>, vector<32x96xbf16>, vector<8x96xf32> -> vector<8x96xf32>
    %c3 = arith.constant 3 : index
    %c0_14 = arith.constant 0 : index
    %32 = vector.load %arg2[%c3, %c0_14] : memref<24x128xf32, #tpu.memory_space<vmem>>, vector<1x96xf32>
    %33 = vector.broadcast %32 : vector<1x96xf32> to vector<8x96xf32>
    %34 = arith.addf %31, %33 : vector<8x96xf32>
    %35 = arith.truncf %34 : vector<8x96xf32> to vector<8x96xbf16>
    %36 = vector.extract_strided_slice %35 {offsets = [0, 0], sizes = [8, 8], strides = [1, 1]} : vector<8x96xbf16> to vector<8x8xbf16>
    %37 = vector.extract_strided_slice %35 {offsets = [0, 32], sizes = [8, 8], strides = [1, 1]} : vector<8x96xbf16> to vector<8x8xbf16>
    %38 = vector.extract_strided_slice %35 {offsets = [0, 64], sizes = [8, 8], strides = [1, 1]} : vector<8x96xbf16> to vector<8x8xbf16>
    %cst_15 = arith.constant dense<0.000000e+00> : vector<8x8xf32>
    %39 = tpu.matmul %36, %37, %cst_15 {dimension_numbers = #tpu.dot_dimension_numbers<[1], [1], [0], [0], [0, 0, 1, 0], [], []>} : vector<8x8xbf16>, vector<8x8xbf16>, vector<8x8xf32> -> vector<8x8xf32>
    %cst_16 = arith.constant dense<0xFF800000> : vector<8xf32>
    %40 = vector.multi_reduction <maximumf>, %39, %cst_16 [1] : vector<8x8xf32> to vector<8xf32>
    %41 = vector.shape_cast %40 : vector<8xf32> to vector<8x1xf32>
    %42 = vector.broadcast %41 : vector<8x1xf32> to vector<8x8xf32>
    %43 = arith.subf %39, %42 : vector<8x8xf32>
    %44 = math.exp %43 : vector<8x8xf32>
    %cst_17 = arith.constant dense<0.000000e+00> : vector<8xf32>
    %45 = vector.multi_reduction <add>, %44, %cst_17 [1] : vector<8x8xf32> to vector<8xf32>
    %46 = vector.shape_cast %45 : vector<8xf32> to vector<8x1xf32>
    %47 = tpu.reciprocal %46 {approx = true} : vector<8x1xf32> -> vector<8x1xf32>
    %48 = vector.broadcast %47 : vector<8x1xf32> to vector<8x8xf32>
    %49 = arith.mulf %44, %48 : vector<8x8xf32>
    %50 = arith.truncf %49 : vector<8x8xf32> to vector<8x8xbf16>
    %cst_18 = arith.constant dense<0.000000e+00> : vector<8x8xf32>
    %51 = tpu.matmul %50, %38, %cst_18 {dimension_numbers = #tpu.dot_dimension_numbers<[1], [0], [0], [1], [0, 0, 1, 1], [], []>} : vector<8x8xbf16>, vector<8x8xbf16>, vector<8x8xf32> -> vector<8x8xf32>
    %52 = vector.extract_strided_slice %35 {offsets = [0, 8], sizes = [8, 8], strides = [1, 1]} : vector<8x96xbf16> to vector<8x8xbf16>
    %53 = vector.extract_strided_slice %35 {offsets = [0, 40], sizes = [8, 8], strides = [1, 1]} : vector<8x96xbf16> to vector<8x8xbf16>
    %54 = vector.extract_strided_slice %35 {offsets = [0, 72], sizes = [8, 8], strides = [1, 1]} : vector<8x96xbf16> to vector<8x8xbf16>
    %cst_19 = arith.constant dense<0.000000e+00> : vector<8x8xf32>
    %55 = tpu.matmul %52, %53, %cst_19 {dimension_numbers = #tpu.dot_dimension_numbers<[1], [1], [0], [0], [0, 0, 1, 0], [], []>} : vector<8x8xbf16>, vector<8x8xbf16>, vector<8x8xf32> -> vector<8x8xf32>
    %cst_20 = arith.constant dense<0xFF800000> : vector<8xf32>
    %56 = vector.multi_reduction <maximumf>, %55, %cst_20 [1] : vector<8x8xf32> to vector<8xf32>
    %57 = vector.shape_cast %56 : vector<8xf32> to vector<8x1xf32>
    %58 = vector.broadcast %57 : vector<8x1xf32> to vector<8x8xf32>
    %59 = arith.subf %55, %58 : vector<8x8xf32>
    %60 = math.exp %59 : vector<8x8xf32>
    %cst_21 = arith.constant dense<0.000000e+00> : vector<8xf32>
    %61 = vector.multi_reduction <add>, %60, %cst_21 [1] : vector<8x8xf32> to vector<8xf32>
    %62 = vector.shape_cast %61 : vector<8xf32> to vector<8x1xf32>
    %63 = tpu.reciprocal %62 {approx = true} : vector<8x1xf32> -> vector<8x1xf32>
    %64 = vector.broadcast %63 : vector<8x1xf32> to vector<8x8xf32>
    %65 = arith.mulf %60, %64 : vector<8x8xf32>
    %66 = arith.truncf %65 : vector<8x8xf32> to vector<8x8xbf16>
    %cst_22 = arith.constant dense<0.000000e+00> : vector<8x8xf32>
    %67 = tpu.matmul %66, %54, %cst_22 {dimension_numbers = #tpu.dot_dimension_numbers<[1], [0], [0], [1], [0, 0, 1, 1], [], []>} : vector<8x8xbf16>, vector<8x8xbf16>, vector<8x8xf32> -> vector<8x8xf32>
    %68 = vector.extract_strided_slice %35 {offsets = [0, 16], sizes = [8, 8], strides = [1, 1]} : vector<8x96xbf16> to vector<8x8xbf16>
    %69 = vector.extract_strided_slice %35 {offsets = [0, 48], sizes = [8, 8], strides = [1, 1]} : vector<8x96xbf16> to vector<8x8xbf16>
    %70 = vector.extract_strided_slice %35 {offsets = [0, 80], sizes = [8, 8], strides = [1, 1]} : vector<8x96xbf16> to vector<8x8xbf16>
    %cst_23 = arith.constant dense<0.000000e+00> : vector<8x8xf32>
    %71 = tpu.matmul %68, %69, %cst_23 {dimension_numbers = #tpu.dot_dimension_numbers<[1], [1], [0], [0], [0, 0, 1, 0], [], []>} : vector<8x8xbf16>, vector<8x8xbf16>, vector<8x8xf32> -> vector<8x8xf32>
    %cst_24 = arith.constant dense<0xFF800000> : vector<8xf32>
    %72 = vector.multi_reduction <maximumf>, %71, %cst_24 [1] : vector<8x8xf32> to vector<8xf32>
    %73 = vector.shape_cast %72 : vector<8xf32> to vector<8x1xf32>
    %74 = vector.broadcast %73 : vector<8x1xf32> to vector<8x8xf32>
    %75 = arith.subf %71, %74 : vector<8x8xf32>
    %76 = math.exp %75 : vector<8x8xf32>
    %cst_25 = arith.constant dense<0.000000e+00> : vector<8xf32>
    %77 = vector.multi_reduction <add>, %76, %cst_25 [1] : vector<8x8xf32> to vector<8xf32>
    %78 = vector.shape_cast %77 : vector<8xf32> to vector<8x1xf32>
    %79 = tpu.reciprocal %78 {approx = true} : vector<8x1xf32> -> vector<8x1xf32>
    %80 = vector.broadcast %79 : vector<8x1xf32> to vector<8x8xf32>
    %81 = arith.mulf %76, %80 : vector<8x8xf32>
    %82 = arith.truncf %81 : vector<8x8xf32> to vector<8x8xbf16>
    %cst_26 = arith.constant dense<0.000000e+00> : vector<8x8xf32>
    %83 = tpu.matmul %82, %70, %cst_26 {dimension_numbers = #tpu.dot_dimension_numbers<[1], [0], [0], [1], [0, 0, 1, 1], [], []>} : vector<8x8xbf16>, vector<8x8xbf16>, vector<8x8xf32> -> vector<8x8xf32>
    %84 = vector.extract_strided_slice %35 {offsets = [0, 24], sizes = [8, 8], strides = [1, 1]} : vector<8x96xbf16> to vector<8x8xbf16>
    %85 = vector.extract_strided_slice %35 {offsets = [0, 56], sizes = [8, 8], strides = [1, 1]} : vector<8x96xbf16> to vector<8x8xbf16>
    %86 = vector.extract_strided_slice %35 {offsets = [0, 88], sizes = [8, 8], strides = [1, 1]} : vector<8x96xbf16> to vector<8x8xbf16>
    %cst_27 = arith.constant dense<0.000000e+00> : vector<8x8xf32>
    %87 = tpu.matmul %84, %85, %cst_27 {dimension_numbers = #tpu.dot_dimension_numbers<[1], [1], [0], [0], [0, 0, 1, 0], [], []>} : vector<8x8xbf16>, vector<8x8xbf16>, vector<8x8xf32> -> vector<8x8xf32>
    %cst_28 = arith.constant dense<0xFF800000> : vector<8xf32>
    %88 = vector.multi_reduction <maximumf>, %87, %cst_28 [1] : vector<8x8xf32> to vector<8xf32>
    %89 = vector.shape_cast %88 : vector<8xf32> to vector<8x1xf32>
    %90 = vector.broadcast %89 : vector<8x1xf32> to vector<8x8xf32>
    %91 = arith.subf %87, %90 : vector<8x8xf32>
    %92 = math.exp %91 : vector<8x8xf32>
    %cst_29 = arith.constant dense<0.000000e+00> : vector<8xf32>
    %93 = vector.multi_reduction <add>, %92, %cst_29 [1] : vector<8x8xf32> to vector<8xf32>
    %94 = vector.shape_cast %93 : vector<8xf32> to vector<8x1xf32>
    %95 = tpu.reciprocal %94 {approx = true} : vector<8x1xf32> -> vector<8x1xf32>
    %96 = vector.broadcast %95 : vector<8x1xf32> to vector<8x8xf32>
    %97 = arith.mulf %92, %96 : vector<8x8xf32>
    %98 = arith.truncf %97 : vector<8x8xf32> to vector<8x8xbf16>
    %cst_30 = arith.constant dense<0.000000e+00> : vector<8x8xf32>
    %99 = tpu.matmul %98, %86, %cst_30 {dimension_numbers = #tpu.dot_dimension_numbers<[1], [0], [0], [1], [0, 0, 1, 1], [], []>} : vector<8x8xbf16>, vector<8x8xbf16>, vector<8x8xf32> -> vector<8x8xf32>
    %100 = tpu.concatenate %51, %67, %83, %99 in 1 : vector<8x8xf32>, vector<8x8xf32>, vector<8x8xf32>, vector<8x8xf32> -> vector<8x32xf32>
    %101 = arith.truncf %100 : vector<8x32xf32> to vector<8x32xbf16>
    %c48 = arith.constant 48 : index
    %c0_31 = arith.constant 0 : index
    %102 = vector.load %arg1[%c48, %c0_31] : memref<368x128xbf16, #tpu.memory_space<vmem>>, vector<32x32xbf16>
    %cst_32 = arith.constant dense<0.000000e+00> : vector<8x32xf32>
    %103 = tpu.matmul %101, %102, %cst_32 {dimension_numbers = #tpu.dot_dimension_numbers<[1], [0], [0], [1], [0, 0, 1, 1], [], []>} : vector<8x32xbf16>, vector<32x32xbf16>, vector<8x32xf32> -> vector<8x32xf32>
    %c4 = arith.constant 4 : index
    %c0_33 = arith.constant 0 : index
    %104 = vector.load %arg2[%c4, %c0_33] : memref<24x128xf32, #tpu.memory_space<vmem>>, vector<1x32xf32>
    %105 = vector.broadcast %104 : vector<1x32xf32> to vector<8x32xf32>
    %106 = arith.addf %103, %105 : vector<8x32xf32>
    %107 = arith.addf %28, %106 : vector<8x32xf32>
    %cst_34 = arith.constant dense<0.000000e+00> : vector<8xf32>
    %108 = vector.multi_reduction <add>, %107, %cst_34 [1] : vector<8x32xf32> to vector<8xf32>
    %109 = vector.shape_cast %108 : vector<8xf32> to vector<8x1xf32>
    %cst_35 = arith.constant 3.200000e+01 : f32
    %110 = vector.broadcast %cst_35 : f32 to vector<8x1xf32>
    %111 = arith.divf %109, %110 : vector<8x1xf32>
    %112 = vector.broadcast %111 : vector<8x1xf32> to vector<8x32xf32>
    %113 = arith.subf %107, %112 : vector<8x32xf32>
    %114 = arith.mulf %113, %113 : vector<8x32xf32>
    %cst_36 = arith.constant dense<0.000000e+00> : vector<8xf32>
    %115 = vector.multi_reduction <add>, %114, %cst_36 [1] : vector<8x32xf32> to vector<8xf32>
    %116 = vector.shape_cast %115 : vector<8xf32> to vector<8x1xf32>
    %cst_37 = arith.constant 3.200000e+01 : f32
    %117 = vector.broadcast %cst_37 : f32 to vector<8x1xf32>
    %118 = arith.divf %116, %117 : vector<8x1xf32>
    %cst_38 = arith.constant 9.99999974E-6 : f32
    %119 = vector.broadcast %cst_38 : f32 to vector<8x1xf32>
    %120 = arith.addf %118, %119 : vector<8x1xf32>
    %121 = math.rsqrt %120 : vector<8x1xf32>
    %122 = vector.broadcast %121 : vector<8x1xf32> to vector<8x32xf32>
    %123 = arith.mulf %113, %122 : vector<8x32xf32>
    %c7 = arith.constant 7 : index
    %c0_39 = arith.constant 0 : index
    %124 = vector.load %arg2[%c7, %c0_39] : memref<24x128xf32, #tpu.memory_space<vmem>>, vector<1x32xf32>
    %125 = vector.broadcast %124 : vector<1x32xf32> to vector<8x32xf32>
    %126 = arith.mulf %123, %125 : vector<8x32xf32>
    %c8 = arith.constant 8 : index
    %c0_40 = arith.constant 0 : index
    %127 = vector.load %arg2[%c8, %c0_40] : memref<24x128xf32, #tpu.memory_space<vmem>>, vector<1x32xf32>
    %128 = vector.broadcast %127 : vector<1x32xf32> to vector<8x32xf32>
    %129 = arith.addf %126, %128 : vector<8x32xf32>
    %130 = arith.truncf %129 : vector<8x32xf32> to vector<8x32xbf16>
    %c80 = arith.constant 80 : index
    %c0_41 = arith.constant 0 : index
    %131 = vector.load %arg1[%c80, %c0_41] : memref<368x128xbf16, #tpu.memory_space<vmem>>, vector<32x64xbf16>
    %cst_42 = arith.constant dense<0.000000e+00> : vector<8x64xf32>
    %132 = tpu.matmul %130, %131, %cst_42 {dimension_numbers = #tpu.dot_dimension_numbers<[1], [0], [0], [1], [0, 0, 1, 1], [], []>} : vector<8x32xbf16>, vector<32x64xbf16>, vector<8x64xf32> -> vector<8x64xf32>
    %c5 = arith.constant 5 : index
    %c0_43 = arith.constant 0 : index
    %133 = vector.load %arg2[%c5, %c0_43] : memref<24x128xf32, #tpu.memory_space<vmem>>, vector<1x64xf32>
    %134 = vector.broadcast %133 : vector<1x64xf32> to vector<8x64xf32>
    %135 = arith.addf %132, %134 : vector<8x64xf32>
    %cst_44 = arith.constant 0.000000e+00 : f32
    %136 = vector.broadcast %cst_44 : f32 to vector<8x64xf32>
    %137 = arith.maximumf %135, %136 : vector<8x64xf32>
    %138 = arith.truncf %137 : vector<8x64xf32> to vector<8x64xbf16>
    %c112 = arith.constant 112 : index
    %c0_45 = arith.constant 0 : index
    %139 = vector.load %arg1[%c112, %c0_45] : memref<368x128xbf16, #tpu.memory_space<vmem>>, vector<64x32xbf16>
    %cst_46 = arith.constant dense<0.000000e+00> : vector<8x32xf32>
    %140 = tpu.matmul %138, %139, %cst_46 {dimension_numbers = #tpu.dot_dimension_numbers<[1], [0], [0], [1], [0, 0, 1, 1], [], []>} : vector<8x64xbf16>, vector<64x32xbf16>, vector<8x32xf32> -> vector<8x32xf32>
    %c6 = arith.constant 6 : index
    %c0_47 = arith.constant 0 : index
    %141 = vector.load %arg2[%c6, %c0_47] : memref<24x128xf32, #tpu.memory_space<vmem>>, vector<1x32xf32>
    %142 = vector.broadcast %141 : vector<1x32xf32> to vector<8x32xf32>
    %143 = arith.addf %140, %142 : vector<8x32xf32>
    %144 = arith.addf %129, %143 : vector<8x32xf32>
    %cst_48 = arith.constant dense<0.000000e+00> : vector<8xf32>
    %145 = vector.multi_reduction <add>, %144, %cst_48 [1] : vector<8x32xf32> to vector<8xf32>
    %146 = vector.shape_cast %145 : vector<8xf32> to vector<8x1xf32>
    %cst_49 = arith.constant 3.200000e+01 : f32
    %147 = vector.broadcast %cst_49 : f32 to vector<8x1xf32>
    %148 = arith.divf %146, %147 : vector<8x1xf32>
    %149 = vector.broadcast %148 : vector<8x1xf32> to vector<8x32xf32>
    %150 = arith.subf %144, %149 : vector<8x32xf32>
    %151 = arith.mulf %150, %150 : vector<8x32xf32>
    %cst_50 = arith.constant dense<0.000000e+00> : vector<8xf32>
    %152 = vector.multi_reduction <add>, %151, %cst_50 [1] : vector<8x32xf32> to vector<8xf32>
    %153 = vector.shape_cast %152 : vector<8xf32> to vector<8x1xf32>
    %cst_51 = arith.constant 3.200000e+01 : f32
    %154 = vector.broadcast %cst_51 : f32 to vector<8x1xf32>
    %155 = arith.divf %153, %154 : vector<8x1xf32>
    %cst_52 = arith.constant 9.99999974E-6 : f32
    %156 = vector.broadcast %cst_52 : f32 to vector<8x1xf32>
    %157 = arith.addf %155, %156 : vector<8x1xf32>
    %158 = math.rsqrt %157 : vector<8x1xf32>
    %159 = vector.broadcast %158 : vector<8x1xf32> to vector<8x32xf32>
    %160 = arith.mulf %150, %159 : vector<8x32xf32>
    %c9 = arith.constant 9 : index
    %c0_53 = arith.constant 0 : index
    %161 = vector.load %arg2[%c9, %c0_53] : memref<24x128xf32, #tpu.memory_space<vmem>>, vector<1x32xf32>
    %162 = vector.broadcast %161 : vector<1x32xf32> to vector<8x32xf32>
    %163 = arith.mulf %160, %162 : vector<8x32xf32>
    %c10 = arith.constant 10 : index
    %c0_54 = arith.constant 0 : index
    %164 = vector.load %arg2[%c10, %c0_54] : memref<24x128xf32, #tpu.memory_space<vmem>>, vector<1x32xf32>
    %165 = vector.broadcast %164 : vector<1x32xf32> to vector<8x32xf32>
    %166 = arith.addf %163, %165 : vector<8x32xf32>
    %167 = arith.truncf %166 : vector<8x32xf32> to vector<8x32xbf16>
    %c176 = arith.constant 176 : index
    %c0_55 = arith.constant 0 : index
    %168 = vector.load %arg1[%c176, %c0_55] : memref<368x128xbf16, #tpu.memory_space<vmem>>, vector<32x96xbf16>
    %cst_56 = arith.constant dense<0.000000e+00> : vector<8x96xf32>
    %169 = tpu.matmul %167, %168, %cst_56 {dimension_numbers = #tpu.dot_dimension_numbers<[1], [0], [0], [1], [0, 0, 1, 1], [], []>} : vector<8x32xbf16>, vector<32x96xbf16>, vector<8x96xf32> -> vector<8x96xf32>
    %c11 = arith.constant 11 : index
    %c0_57 = arith.constant 0 : index
    %170 = vector.load %arg2[%c11, %c0_57] : memref<24x128xf32, #tpu.memory_space<vmem>>, vector<1x96xf32>
    %171 = vector.broadcast %170 : vector<1x96xf32> to vector<8x96xf32>
    %172 = arith.addf %169, %171 : vector<8x96xf32>
    %173 = arith.truncf %172 : vector<8x96xf32> to vector<8x96xbf16>
    %174 = vector.extract_strided_slice %173 {offsets = [0, 0], sizes = [8, 8], strides = [1, 1]} : vector<8x96xbf16> to vector<8x8xbf16>
    %175 = vector.extract_strided_slice %173 {offsets = [0, 32], sizes = [8, 8], strides = [1, 1]} : vector<8x96xbf16> to vector<8x8xbf16>
    %176 = vector.extract_strided_slice %173 {offsets = [0, 64], sizes = [8, 8], strides = [1, 1]} : vector<8x96xbf16> to vector<8x8xbf16>
    %cst_58 = arith.constant dense<0.000000e+00> : vector<8x8xf32>
    %177 = tpu.matmul %174, %175, %cst_58 {dimension_numbers = #tpu.dot_dimension_numbers<[1], [1], [0], [0], [0, 0, 1, 0], [], []>} : vector<8x8xbf16>, vector<8x8xbf16>, vector<8x8xf32> -> vector<8x8xf32>
    %cst_59 = arith.constant dense<0xFF800000> : vector<8xf32>
    %178 = vector.multi_reduction <maximumf>, %177, %cst_59 [1] : vector<8x8xf32> to vector<8xf32>
    %179 = vector.shape_cast %178 : vector<8xf32> to vector<8x1xf32>
    %180 = vector.broadcast %179 : vector<8x1xf32> to vector<8x8xf32>
    %181 = arith.subf %177, %180 : vector<8x8xf32>
    %182 = math.exp %181 : vector<8x8xf32>
    %cst_60 = arith.constant dense<0.000000e+00> : vector<8xf32>
    %183 = vector.multi_reduction <add>, %182, %cst_60 [1] : vector<8x8xf32> to vector<8xf32>
    %184 = vector.shape_cast %183 : vector<8xf32> to vector<8x1xf32>
    %185 = tpu.reciprocal %184 {approx = true} : vector<8x1xf32> -> vector<8x1xf32>
    %186 = vector.broadcast %185 : vector<8x1xf32> to vector<8x8xf32>
    %187 = arith.mulf %182, %186 : vector<8x8xf32>
    %188 = arith.truncf %187 : vector<8x8xf32> to vector<8x8xbf16>
    %cst_61 = arith.constant dense<0.000000e+00> : vector<8x8xf32>
    %189 = tpu.matmul %188, %176, %cst_61 {dimension_numbers = #tpu.dot_dimension_numbers<[1], [0], [0], [1], [0, 0, 1, 1], [], []>} : vector<8x8xbf16>, vector<8x8xbf16>, vector<8x8xf32> -> vector<8x8xf32>
    %190 = vector.extract_strided_slice %173 {offsets = [0, 8], sizes = [8, 8], strides = [1, 1]} : vector<8x96xbf16> to vector<8x8xbf16>
    %191 = vector.extract_strided_slice %173 {offsets = [0, 40], sizes = [8, 8], strides = [1, 1]} : vector<8x96xbf16> to vector<8x8xbf16>
    %192 = vector.extract_strided_slice %173 {offsets = [0, 72], sizes = [8, 8], strides = [1, 1]} : vector<8x96xbf16> to vector<8x8xbf16>
    %cst_62 = arith.constant dense<0.000000e+00> : vector<8x8xf32>
    %193 = tpu.matmul %190, %191, %cst_62 {dimension_numbers = #tpu.dot_dimension_numbers<[1], [1], [0], [0], [0, 0, 1, 0], [], []>} : vector<8x8xbf16>, vector<8x8xbf16>, vector<8x8xf32> -> vector<8x8xf32>
    %cst_63 = arith.constant dense<0xFF800000> : vector<8xf32>
    %194 = vector.multi_reduction <maximumf>, %193, %cst_63 [1] : vector<8x8xf32> to vector<8xf32>
    %195 = vector.shape_cast %194 : vector<8xf32> to vector<8x1xf32>
    %196 = vector.broadcast %195 : vector<8x1xf32> to vector<8x8xf32>
    %197 = arith.subf %193, %196 : vector<8x8xf32>
    %198 = math.exp %197 : vector<8x8xf32>
    %cst_64 = arith.constant dense<0.000000e+00> : vector<8xf32>
    %199 = vector.multi_reduction <add>, %198, %cst_64 [1] : vector<8x8xf32> to vector<8xf32>
    %200 = vector.shape_cast %199 : vector<8xf32> to vector<8x1xf32>
    %201 = tpu.reciprocal %200 {approx = true} : vector<8x1xf32> -> vector<8x1xf32>
    %202 = vector.broadcast %201 : vector<8x1xf32> to vector<8x8xf32>
    %203 = arith.mulf %198, %202 : vector<8x8xf32>
    %204 = arith.truncf %203 : vector<8x8xf32> to vector<8x8xbf16>
    %cst_65 = arith.constant dense<0.000000e+00> : vector<8x8xf32>
    %205 = tpu.matmul %204, %192, %cst_65 {dimension_numbers = #tpu.dot_dimension_numbers<[1], [0], [0], [1], [0, 0, 1, 1], [], []>} : vector<8x8xbf16>, vector<8x8xbf16>, vector<8x8xf32> -> vector<8x8xf32>
    %206 = vector.extract_strided_slice %173 {offsets = [0, 16], sizes = [8, 8], strides = [1, 1]} : vector<8x96xbf16> to vector<8x8xbf16>
    %207 = vector.extract_strided_slice %173 {offsets = [0, 48], sizes = [8, 8], strides = [1, 1]} : vector<8x96xbf16> to vector<8x8xbf16>
    %208 = vector.extract_strided_slice %173 {offsets = [0, 80], sizes = [8, 8], strides = [1, 1]} : vector<8x96xbf16> to vector<8x8xbf16>
    %cst_66 = arith.constant dense<0.000000e+00> : vector<8x8xf32>
    %209 = tpu.matmul %206, %207, %cst_66 {dimension_numbers = #tpu.dot_dimension_numbers<[1], [1], [0], [0], [0, 0, 1, 0], [], []>} : vector<8x8xbf16>, vector<8x8xbf16>, vector<8x8xf32> -> vector<8x8xf32>
    %cst_67 = arith.constant dense<0xFF800000> : vector<8xf32>
    %210 = vector.multi_reduction <maximumf>, %209, %cst_67 [1] : vector<8x8xf32> to vector<8xf32>
    %211 = vector.shape_cast %210 : vector<8xf32> to vector<8x1xf32>
    %212 = vector.broadcast %211 : vector<8x1xf32> to vector<8x8xf32>
    %213 = arith.subf %209, %212 : vector<8x8xf32>
    %214 = math.exp %213 : vector<8x8xf32>
    %cst_68 = arith.constant dense<0.000000e+00> : vector<8xf32>
    %215 = vector.multi_reduction <add>, %214, %cst_68 [1] : vector<8x8xf32> to vector<8xf32>
    %216 = vector.shape_cast %215 : vector<8xf32> to vector<8x1xf32>
    %217 = tpu.reciprocal %216 {approx = true} : vector<8x1xf32> -> vector<8x1xf32>
    %218 = vector.broadcast %217 : vector<8x1xf32> to vector<8x8xf32>
    %219 = arith.mulf %214, %218 : vector<8x8xf32>
    %220 = arith.truncf %219 : vector<8x8xf32> to vector<8x8xbf16>
    %cst_69 = arith.constant dense<0.000000e+00> : vector<8x8xf32>
    %221 = tpu.matmul %220, %208, %cst_69 {dimension_numbers = #tpu.dot_dimension_numbers<[1], [0], [0], [1], [0, 0, 1, 1], [], []>} : vector<8x8xbf16>, vector<8x8xbf16>, vector<8x8xf32> -> vector<8x8xf32>
    %222 = vector.extract_strided_slice %173 {offsets = [0, 24], sizes = [8, 8], strides = [1, 1]} : vector<8x96xbf16> to vector<8x8xbf16>
    %223 = vector.extract_strided_slice %173 {offsets = [0, 56], sizes = [8, 8], strides = [1, 1]} : vector<8x96xbf16> to vector<8x8xbf16>
    %224 = vector.extract_strided_slice %173 {offsets = [0, 88], sizes = [8, 8], strides = [1, 1]} : vector<8x96xbf16> to vector<8x8xbf16>
    %cst_70 = arith.constant dense<0.000000e+00> : vector<8x8xf32>
    %225 = tpu.matmul %222, %223, %cst_70 {dimension_numbers = #tpu.dot_dimension_numbers<[1], [1], [0], [0], [0, 0, 1, 0], [], []>} : vector<8x8xbf16>, vector<8x8xbf16>, vector<8x8xf32> -> vector<8x8xf32>
    %cst_71 = arith.constant dense<0xFF800000> : vector<8xf32>
    %226 = vector.multi_reduction <maximumf>, %225, %cst_71 [1] : vector<8x8xf32> to vector<8xf32>
    %227 = vector.shape_cast %226 : vector<8xf32> to vector<8x1xf32>
    %228 = vector.broadcast %227 : vector<8x1xf32> to vector<8x8xf32>
    %229 = arith.subf %225, %228 : vector<8x8xf32>
    %230 = math.exp %229 : vector<8x8xf32>
    %cst_72 = arith.constant dense<0.000000e+00> : vector<8xf32>
    %231 = vector.multi_reduction <add>, %230, %cst_72 [1] : vector<8x8xf32> to vector<8xf32>
    %232 = vector.shape_cast %231 : vector<8xf32> to vector<8x1xf32>
    %233 = tpu.reciprocal %232 {approx = true} : vector<8x1xf32> -> vector<8x1xf32>
    %234 = vector.broadcast %233 : vector<8x1xf32> to vector<8x8xf32>
    %235 = arith.mulf %230, %234 : vector<8x8xf32>
    %236 = arith.truncf %235 : vector<8x8xf32> to vector<8x8xbf16>
    %cst_73 = arith.constant dense<0.000000e+00> : vector<8x8xf32>
    %237 = tpu.matmul %236, %224, %cst_73 {dimension_numbers = #tpu.dot_dimension_numbers<[1], [0], [0], [1], [0, 0, 1, 1], [], []>} : vector<8x8xbf16>, vector<8x8xbf16>, vector<8x8xf32> -> vector<8x8xf32>
    %238 = tpu.concatenate %189, %205, %221, %237 in 1 : vector<8x8xf32>, vector<8x8xf32>, vector<8x8xf32>, vector<8x8xf32> -> vector<8x32xf32>
    %239 = arith.truncf %238 : vector<8x32xf32> to vector<8x32xbf16>
    %c208 = arith.constant 208 : index
    %c0_74 = arith.constant 0 : index
    %240 = vector.load %arg1[%c208, %c0_74] : memref<368x128xbf16, #tpu.memory_space<vmem>>, vector<32x32xbf16>
    %cst_75 = arith.constant dense<0.000000e+00> : vector<8x32xf32>
    %241 = tpu.matmul %239, %240, %cst_75 {dimension_numbers = #tpu.dot_dimension_numbers<[1], [0], [0], [1], [0, 0, 1, 1], [], []>} : vector<8x32xbf16>, vector<32x32xbf16>, vector<8x32xf32> -> vector<8x32xf32>
    %c12 = arith.constant 12 : index
    %c0_76 = arith.constant 0 : index
    %242 = vector.load %arg2[%c12, %c0_76] : memref<24x128xf32, #tpu.memory_space<vmem>>, vector<1x32xf32>
    %243 = vector.broadcast %242 : vector<1x32xf32> to vector<8x32xf32>
    %244 = arith.addf %241, %243 : vector<8x32xf32>
    %245 = arith.addf %166, %244 : vector<8x32xf32>
    %cst_77 = arith.constant dense<0.000000e+00> : vector<8xf32>
    %246 = vector.multi_reduction <add>, %245, %cst_77 [1] : vector<8x32xf32> to vector<8xf32>
    %247 = vector.shape_cast %246 : vector<8xf32> to vector<8x1xf32>
    %cst_78 = arith.constant 3.200000e+01 : f32
    %248 = vector.broadcast %cst_78 : f32 to vector<8x1xf32>
    %249 = arith.divf %247, %248 : vector<8x1xf32>
    %250 = vector.broadcast %249 : vector<8x1xf32> to vector<8x32xf32>
    %251 = arith.subf %245, %250 : vector<8x32xf32>
    %252 = arith.mulf %251, %251 : vector<8x32xf32>
    %cst_79 = arith.constant dense<0.000000e+00> : vector<8xf32>
    %253 = vector.multi_reduction <add>, %252, %cst_79 [1] : vector<8x32xf32> to vector<8xf32>
    %254 = vector.shape_cast %253 : vector<8xf32> to vector<8x1xf32>
    %cst_80 = arith.constant 3.200000e+01 : f32
    %255 = vector.broadcast %cst_80 : f32 to vector<8x1xf32>
    %256 = arith.divf %254, %255 : vector<8x1xf32>
    %cst_81 = arith.constant 9.99999974E-6 : f32
    %257 = vector.broadcast %cst_81 : f32 to vector<8x1xf32>
    %258 = arith.addf %256, %257 : vector<8x1xf32>
    %259 = math.rsqrt %258 : vector<8x1xf32>
    %260 = vector.broadcast %259 : vector<8x1xf32> to vector<8x32xf32>
    %261 = arith.mulf %251, %260 : vector<8x32xf32>
    %c15 = arith.constant 15 : index
    %c0_82 = arith.constant 0 : index
    %262 = vector.load %arg2[%c15, %c0_82] : memref<24x128xf32, #tpu.memory_space<vmem>>, vector<1x32xf32>
    %263 = vector.broadcast %262 : vector<1x32xf32> to vector<8x32xf32>
    %264 = arith.mulf %261, %263 : vector<8x32xf32>
    %c16_83 = arith.constant 16 : index
    %c0_84 = arith.constant 0 : index
    %265 = vector.load %arg2[%c16_83, %c0_84] : memref<24x128xf32, #tpu.memory_space<vmem>>, vector<1x32xf32>
    %266 = vector.broadcast %265 : vector<1x32xf32> to vector<8x32xf32>
    %267 = arith.addf %264, %266 : vector<8x32xf32>
    %268 = arith.truncf %267 : vector<8x32xf32> to vector<8x32xbf16>
    %c240 = arith.constant 240 : index
    %c0_85 = arith.constant 0 : index
    %269 = vector.load %arg1[%c240, %c0_85] : memref<368x128xbf16, #tpu.memory_space<vmem>>, vector<32x64xbf16>
    %cst_86 = arith.constant dense<0.000000e+00> : vector<8x64xf32>
    %270 = tpu.matmul %268, %269, %cst_86 {dimension_numbers = #tpu.dot_dimension_numbers<[1], [0], [0], [1], [0, 0, 1, 1], [], []>} : vector<8x32xbf16>, vector<32x64xbf16>, vector<8x64xf32> -> vector<8x64xf32>
    %c13 = arith.constant 13 : index
    %c0_87 = arith.constant 0 : index
    %271 = vector.load %arg2[%c13, %c0_87] : memref<24x128xf32, #tpu.memory_space<vmem>>, vector<1x64xf32>
    %272 = vector.broadcast %271 : vector<1x64xf32> to vector<8x64xf32>
    %273 = arith.addf %270, %272 : vector<8x64xf32>
    %cst_88 = arith.constant 0.000000e+00 : f32
    %274 = vector.broadcast %cst_88 : f32 to vector<8x64xf32>
    %275 = arith.maximumf %273, %274 : vector<8x64xf32>
    %276 = arith.truncf %275 : vector<8x64xf32> to vector<8x64xbf16>
    %c272 = arith.constant 272 : index
    %c0_89 = arith.constant 0 : index
    %277 = vector.load %arg1[%c272, %c0_89] : memref<368x128xbf16, #tpu.memory_space<vmem>>, vector<64x32xbf16>
    %cst_90 = arith.constant dense<0.000000e+00> : vector<8x32xf32>
    %278 = tpu.matmul %276, %277, %cst_90 {dimension_numbers = #tpu.dot_dimension_numbers<[1], [0], [0], [1], [0, 0, 1, 1], [], []>} : vector<8x64xbf16>, vector<64x32xbf16>, vector<8x32xf32> -> vector<8x32xf32>
    %c14 = arith.constant 14 : index
    %c0_91 = arith.constant 0 : index
    %279 = vector.load %arg2[%c14, %c0_91] : memref<24x128xf32, #tpu.memory_space<vmem>>, vector<1x32xf32>
    %280 = vector.broadcast %279 : vector<1x32xf32> to vector<8x32xf32>
    %281 = arith.addf %278, %280 : vector<8x32xf32>
    %282 = arith.addf %267, %281 : vector<8x32xf32>
    %cst_92 = arith.constant dense<0.000000e+00> : vector<8xf32>
    %283 = vector.multi_reduction <add>, %282, %cst_92 [1] : vector<8x32xf32> to vector<8xf32>
    %284 = vector.shape_cast %283 : vector<8xf32> to vector<8x1xf32>
    %cst_93 = arith.constant 3.200000e+01 : f32
    %285 = vector.broadcast %cst_93 : f32 to vector<8x1xf32>
    %286 = arith.divf %284, %285 : vector<8x1xf32>
    %287 = vector.broadcast %286 : vector<8x1xf32> to vector<8x32xf32>
    %288 = arith.subf %282, %287 : vector<8x32xf32>
    %289 = arith.mulf %288, %288 : vector<8x32xf32>
    %cst_94 = arith.constant dense<0.000000e+00> : vector<8xf32>
    %290 = vector.multi_reduction <add>, %289, %cst_94 [1] : vector<8x32xf32> to vector<8xf32>
    %291 = vector.shape_cast %290 : vector<8xf32> to vector<8x1xf32>
    %cst_95 = arith.constant 3.200000e+01 : f32
    %292 = vector.broadcast %cst_95 : f32 to vector<8x1xf32>
    %293 = arith.divf %291, %292 : vector<8x1xf32>
    %cst_96 = arith.constant 9.99999974E-6 : f32
    %294 = vector.broadcast %cst_96 : f32 to vector<8x1xf32>
    %295 = arith.addf %293, %294 : vector<8x1xf32>
    %296 = math.rsqrt %295 : vector<8x1xf32>
    %297 = vector.broadcast %296 : vector<8x1xf32> to vector<8x32xf32>
    %298 = arith.mulf %288, %297 : vector<8x32xf32>
    %c17 = arith.constant 17 : index
    %c0_97 = arith.constant 0 : index
    %299 = vector.load %arg2[%c17, %c0_97] : memref<24x128xf32, #tpu.memory_space<vmem>>, vector<1x32xf32>
    %300 = vector.broadcast %299 : vector<1x32xf32> to vector<8x32xf32>
    %301 = arith.mulf %298, %300 : vector<8x32xf32>
    %c18 = arith.constant 18 : index
    %c0_98 = arith.constant 0 : index
    %302 = vector.load %arg2[%c18, %c0_98] : memref<24x128xf32, #tpu.memory_space<vmem>>, vector<1x32xf32>
    %303 = vector.broadcast %302 : vector<1x32xf32> to vector<8x32xf32>
    %304 = arith.addf %301, %303 : vector<8x32xf32>
    %305 = arith.truncf %304 : vector<8x32xf32> to vector<8x32xbf16>
    %c336 = arith.constant 336 : index
    %c0_99 = arith.constant 0 : index
    %306 = vector.load %arg1[%c336, %c0_99] : memref<368x128xbf16, #tpu.memory_space<vmem>>, vector<32x128xbf16>
    %cst_100 = arith.constant dense<0.000000e+00> : vector<8x128xf32>
    %307 = tpu.matmul %305, %306, %cst_100 {dimension_numbers = #tpu.dot_dimension_numbers<[1], [0], [0], [1], [0, 0, 1, 1], [], []>} : vector<8x32xbf16>, vector<32x128xbf16>, vector<8x128xf32> -> vector<8x128xf32>
    %c19 = arith.constant 19 : index
    %c0_101 = arith.constant 0 : index
    %308 = vector.load %arg2[%c19, %c0_101] : memref<24x128xf32, #tpu.memory_space<vmem>>, vector<1x128xf32>
    %309 = vector.broadcast %308 : vector<1x128xf32> to vector<8x128xf32>
    %310 = arith.addf %307, %309 : vector<8x128xf32>
    %311 = tpu.iota {dimensions = array<i32: 1>} : vector<8x128xi32>
    %c10_i32 = arith.constant 10 : i32
    %312 = vector.broadcast %c10_i32 : i32 to vector<8x128xi32>
    %313 = arith.cmpi slt, %311, %312 : vector<8x128xi32>
    %cst_102 = arith.constant -1.000000e+30 : f32
    %314 = vector.broadcast %cst_102 : f32 to vector<8x128xf32>
    %315 = arith.select %313, %310, %314 : vector<8x128xi1>, vector<8x128xf32>
    %cst_103 = arith.constant dense<0xFF800000> : vector<8xf32>
    %316 = vector.multi_reduction <maximumf>, %315, %cst_103 [1] : vector<8x128xf32> to vector<8xf32>
    %317 = vector.shape_cast %316 : vector<8xf32> to vector<8x1xf32>
    %318 = vector.broadcast %317 : vector<8x1xf32> to vector<8x128xf32>
    %319 = arith.subf %315, %318 : vector<8x128xf32>
    %320 = math.exp %319 : vector<8x128xf32>
    %cst_104 = arith.constant dense<0.000000e+00> : vector<8xf32>
    %321 = vector.multi_reduction <add>, %320, %cst_104 [1] : vector<8x128xf32> to vector<8xf32>
    %322 = vector.shape_cast %321 : vector<8xf32> to vector<8x1xf32>
    %323 = vector.broadcast %322 : vector<8x1xf32> to vector<8x128xf32>
    %324 = arith.divf %320, %323 : vector<8x128xf32>
    %325 = arith.negf %310 : vector<8x128xf32>
    %326 = math.exp %325 : vector<8x128xf32>
    %cst_105 = arith.constant 1.000000e+00 : f32
    %327 = vector.broadcast %cst_105 : f32 to vector<8x128xf32>
    %328 = arith.addf %327, %326 : vector<8x128xf32>
    %329 = arith.divf %327, %328 : vector<8x128xf32>
    %c10_i32_106 = arith.constant 10 : i32
    %330 = vector.broadcast %c10_i32_106 : i32 to vector<8x128xi32>
    %331 = arith.cmpi slt, %311, %330 : vector<8x128xi32>
    %332 = arith.select %331, %324, %329 : vector<8x128xi1>, vector<8x128xf32>
    %c0_107 = arith.constant 0 : index
    %c0_108 = arith.constant 0 : index
    %333 = vector.load %arg3[%c0_107, %c0_108] : memref<8x128xf32, #tpu.memory_space<vmem>>, vector<8x128xf32>
    tpu.vector_store %arg3[%c0_107, %c0_108], %332 {strides = array<i32>} : memref<8x128xf32, #tpu.memory_space<vmem>>, vector<8x128xf32>,
    return
  }
}

</mosaic_0001>

<llo_original>
// kernel: gated_transformer_forward.1
$region0: #{gated_transformer_forward.1}
  #allocation0 [shape = 'u32[]', space=smem, size = 0x4, offset = 0x4, fixed_abs, tag = 'smem constant byte address 0x4 - core index']
  #allocation1 [shape = 'u32[72,128]{1,0:T(1,128)}', space=vmem, size = 0x9000, scoped, tag = 'internal scratch']
  %s0 = inlined_call_operand.vmem [shape: f32[8,8], index: 0, kind: input, shape index: {}]
  %s1 = inlined_call_operand.hbm [shape: bf16[368,128], index: 1, kind: input, shape index: {}]
  %s2 = inlined_call_operand.vmem [shape: f32[24,128], index: 2, kind: input, shape index: {}]
  %s3 = inlined_call_operand.vmem [shape: f32[8,128], index: 3, kind: output, shape index: {}]
  %s4 = sld [smem:[#allocation0]]
  $region26: #{gated_transformer_forward.1} parent=0
    _
  %s6 = ssub.s32 1, %s4
  %s7 = scalar_select 0, %s6, %s4
  $region1: #{gated_transformer_forward.1} parent=0
    #allocation2 [shape = 'u8[94208]{0}', space=vmem, size = 0x17000, scoped, tag = 'input window, operand 1, single buffered']
    #allocation3 [shape = 's32[1]{0}', space=sflag, size = 0x4, scoped, tag = 'scoped memory for gated_transformer_forward.1']
    %8 = vsyncpa [#allocation3], 0
    // Predicated region
    $region2: #{gated_transformer_forward.1} parent=1 // pred_check
      _
    $region3: #{gated_transformer_forward.1} parent=1 // pred_check_branch
      %10 = sbr.rel (0) target = $region5
    $region4: #{gated_transformer_forward.1} parent=1 // pred_region
      _
    $region5: #{gated_transformer_forward.1} parent=1 // pred_fallthru
      _
    // Predicated region
    $region6: #{gated_transformer_forward.1} parent=1 // pred_check
      _
    $region7: #{gated_transformer_forward.1} parent=1 // pred_check_branch
      %12 = sbr.rel (0) target = $region9
    $region8: #{gated_transformer_forward.1} parent=1 // pred_region
      %14 = vsyncadd [#allocation3], 0
      %s15 = sshll.u32 %s1, 4
      %s16 = int_to_ptr.hbm [resolvable:$true] %s15
      %s17 = sshll.u32 [#allocation2], 4
      %s18 = int_to_ptr.vmem [resolvable:$true] %s17
      %23 = dma.hbm_to_vmem [thread:$0]  %s16, 2944, %s18, [#allocation3], 64, 64, 4
    $region9: #{gated_transformer_forward.1} parent=1 // pred_fallthru
      _
    // Predicated region
    $region10: #{gated_transformer_forward.1} parent=1 // pred_check
      _
    $region11: #{gated_transformer_forward.1} parent=1 // pred_check_branch
      %25 = sbr.rel (0) target = $region13
    $region12: #{gated_transformer_forward.1} parent=1 // pred_region
      _
    $region13: #{gated_transformer_forward.1} parent=1 // pred_fallthru
      _
    // Predicated region
    $region14: #{gated_transformer_forward.1} parent=1 // pred_check
      _
    $region15: #{gated_transformer_forward.1} parent=1 // pred_check_branch
      %27 = sbr.rel (0) target = $region17
    $region16: #{gated_transformer_forward.1} parent=1 // pred_region
      %29 = dma.done [#allocation3], 2944
    $region17: #{gated_transformer_forward.1} parent=1 // pred_fallthru
      _
    %v31 = vld [vmem:[%s0] sm:$0xff]
    %v32 = vpack.c.bf16 %v31, %v31
    %v33 = vld [vmem:[#allocation2] sm:$0xf]
    %v34 = vld [vmem:[%s2] sm:$0x1]
    %v35 = vperm.slane %v34, 0
    %vm36 = vcmask 64512
    %v38 = vsel %vm36, %v32, 0
    %vm40 = vcmask 1043456
    %v42 = vsel %vm40, %v33, 0
    %44 = vmatpush.bf16.msra.mxu0 0
    %45 = vmatpush.bf16.msra.mxu0 0
    %46 = vmatpush.bf16.msra.mxu0 0
    %47 = vmatpush.bf16.msra.mxu0 0
    %48 = vmatpush.bf16.msra.mxu0 0
    %49 = vmatpush.bf16.msra.mxu0 0
    %50 = vmatpush.bf16.msra.mxu0 0
    %51 = vmatpush.bf16.msra.mxu0 %v42
    %52 = vmatmul.bf16.gmra.mxu0 %v38
    %v53 = vpop.f32.mrf.mxu0
    %v54 = vadd.f32 %v35, %v53
    %v55 = vpop.f32.mrf.mxu0
    %56 = vdwg.mxu0
    %vm57 = vcmask 261120
    %v58 = vsel %vm57, %v54, 0.0
    %59 = vadd.xlane.f32.xlu0 %v58
    %v60 = vpop.xlane.xlu0 %59
    %v61 = vrcp.pop 32.0
    %v62 = vmul.f32 32.0, %v61
    %v63 = vsub.f32 1.0, %v62
    %v64 = vmul.f32 %v61, %v63
    %v65 = vadd.f32 %v61, %v64
    %vm66 = vweird.f32 %v61
    %v67 = vsel %vm66, %v61, %v65
    %v68 = vmul.f32 %v60, %v67
    %v69 = vsub.f32 %v54, %v68
    %v70 = vmul.f32 %v69, %v69
    %v71 = vsel %vm57, %v70, 0.0
    %72 = vadd.xlane.f32.xlu0 %v71
    %v73 = vpop.xlane.xlu0 %72
    %v74 = vmul.f32 %v73, %v67
    %v75 = vadd.f32 %v74, 1e-05
    %v76 = vrsqrt.pop %v75
    %v77 = vmul.f32 %v76, %v75
    %v78 = vmul.f32 %v77, %v76
    %v79 = vmul.f32 0.5, %v78
    %v80 = vsub.f32 1.5, %v79
    %v81 = vmul.f32 %v76, %v80
    %vm82 = vweird.f32 %v75
    %vm83 = vweird.f32 %v76
    %vm84 = vmor %vm82, %vm83
    %v85 = vsel %vm84, %v76, %v81
    %v86 = vmul.f32 %v69, %v85
    %v87 = vld [vmem:[%s2 + $0x1] sm:$0x1]
    %v88 = vperm.slane %v87, 0
    %v89 = vmul.f32 %v86, %v88
    %v90 = vld [vmem:[%s2 + $0x2] sm:$0x1]
    %v91 = vperm.slane %v90, 0
    %v92 = vadd.f32 %v89, %v91
    %v93 = vpack.c.bf16 %v92, %v92
    %v94 = vld [vmem:[#allocation2 + $0x8] sm:$0xf]
    %v95 = vld [vmem:[#allocation2 + $0xc] sm:$0xf]
    %v96 = vld [vmem:[#allocation2 + $0x10] sm:$0xf]
    %v97 = vld [vmem:[#allocation2 + $0x14] sm:$0xf]
    %v98 = vld [vmem:[%s2 + $0x3] sm:$0x1]
    %v99 = vperm.slane %v98, 0
    %v104 = vunpack.c.l.b16 %v94
    %v105 = vunpack.c.l.b16 %v95
    %v106 = vunpack.c.l.b16 %v96
    %v107 = vunpack.c.l.b16 %v97
    %v108 = vpack.c.b16 %v105, %v104
    %v109 = vpack.c.b16 %v107, %v106
    %v113 = vsel %vm57, %v93, 0
    %115 = vmatpush.bf16.msra.mxu0 0
    %116 = vmatpush.bf16.msra.mxu0 0
    %117 = vmatpush.bf16.msra.mxu0 0
    %118 = vmatpush.bf16.msra.mxu0 0
    %119 = vmatpush.bf16.msra.mxu0 0
    %120 = vmatpush.bf16.msra.mxu0 0
    %121 = vmatpush.bf16.msra.mxu0 %v109
    %122 = vmatpush.bf16.msra.mxu0 %v108
    %123 = vmatmul.bf16.gmra.mxu0 %v113
    %v124 = vpop.f32.mrf.mxu0
    %v125 = vadd.f32 %v99, %v124
    %v126 = vpop.f32.mrf.mxu0
    %127 = vdwg.mxu0
    %v128 = vpack.c.bf16 %v125, %v125
    %v130 = vunpack.c.l.b16 %v128
    %v131 = vpack.c.b16 %v130, %v130
    %132 = vrot.lane.b32.xlu0 %v131, 96
    %v133 = vpop.permute.xlu0 %132
    %v135 = vsel %vm36, %v128, 0
    %v138 = vsel %vm36, %v133, 0
    %140 = vmatpush.bf16.xpose.msra.mxu0 0
    %141 = vmatpush.bf16.xpose.msra.mxu0 0
    %142 = vmatpush.bf16.xpose.msra.mxu0 0
    %143 = vmatpush.bf16.xpose.msra.mxu0 0
    %144 = vmatpush.bf16.xpose.msra.mxu0 0
    %145 = vmatpush.bf16.xpose.msra.mxu0 0
    %146 = vmatpush.bf16.xpose.msra.mxu0 0
    %147 = vmatpush.bf16.xpose.msra.mxu0 %v138
    %148 = vmatmul.bf16.gmra.mxu0 %v135
    %v149 = vpop.f32.mrf.mxu0
    %v150 = vadd.f32 0.0, %v149
    %v151 = vpop.f32.mrf.mxu0
    %152 = vdwg.mxu0
    %v153 = vsel %vm36, %v150, -inf
    %154 = vmax.xlane.f32.xlu0 %v153
    %v155 = vpop.xlane.xlu0 %154
    %v156 = vsub.f32 %v150, %v155
    %v157 = vmul.f32 %v156, 1.442695
    %v158 = vpow.pop %v157
    %v159 = vsel %vm36, %v158, 0.0
    %160 = vadd.xlane.f32.xlu0 %v159
    %v161 = vpop.xlane.xlu0 %160
    %v162 = vrcp.pop %v161
    %v163 = vmul.f32 %v158, %v162
    %v164 = vpack.c.bf16 %v163, %v163
    %165 = vrot.lane.b32.xlu0 %v131, 64
    %v166 = vpop.permute.xlu0 %165
    %v168 = vsel %vm36, %v164, 0
    %v171 = vsel %vm40, %v166, 0
    %173 = vmatpush.bf16.msra.mxu0 0
    %174 = vmatpush.bf16.msra.mxu0 0
    %175 = vmatpush.bf16.msra.mxu0 0
    %176 = vmatpush.bf16.msra.mxu0 0
    %177 = vmatpush.bf16.msra.mxu0 0
    %178 = vmatpush.bf16.msra.mxu0 0
    %179 = vmatpush.bf16.msra.mxu0 0
    %180 = vmatpush.bf16.msra.mxu0 %v171
    %181 = vmatmul.bf16.gmra.mxu0 %v168
    %v182 = vpop.f32.mrf.mxu0
    %v183 = vadd.f32 0.0, %v182
    %v184 = vpop.f32.mrf.mxu0
    %185 = vdwg.mxu0
    %186 = vrot.lane.b32.xlu0 %v131, 120
    %v187 = vpop.permute.xlu0 %186
    %188 = vrot.lane.b32.xlu0 %v131, 88
    %v189 = vpop.permute.xlu0 %188
    %v191 = vsel %vm36, %v187, 0
    %v194 = vsel %vm36, %v189, 0
    %196 = vmatpush.bf16.xpose.msra.mxu0 0
    %197 = vmatpush.bf16.xpose.msra.mxu0 0
    %198 = vmatpush.bf16.xpose.msra.mxu0 0
    %199 = vmatpush.bf16.xpose.msra.mxu0 0
    %200 = vmatpush.bf16.xpose.msra.mxu0 0
    %201 = vmatpush.bf16.xpose.msra.mxu0 0
    %202 = vmatpush.bf16.xpose.msra.mxu0 0
    %203 = vmatpush.bf16.xpose.msra.mxu0 %v194
    %204 = vmatmul.bf16.gmra.mxu0 %v191
    %v205 = vpop.f32.mrf.mxu0
    %v206 = vadd.f32 0.0, %v205
    %v207 = vpop.f32.mrf.mxu0
    %208 = vdwg.mxu0
    %v209 = vsel %vm36, %v206, -inf
    %210 = vmax.xlane.f32.xlu0 %v209
    %v211 = vpop.xlane.xlu0 %210
    %v212 = vsub.f32 %v206, %v211
    %v213 = vmul.f32 %v212, 1.442695
    %v214 = vpow.pop %v213
    %v215 = vsel %vm36, %v214, 0.0
    %216 = vadd.xlane.f32.xlu0 %v215
    %v217 = vpop.xlane.xlu0 %216
    %v218 = vrcp.pop %v217
    %v219 = vmul.f32 %v214, %v218
    %v220 = vpack.c.bf16 %v219, %v219
    %221 = vrot.lane.b32.xlu0 %v131, 56
    %v222 = vpop.permute.xlu0 %221
    %v224 = vsel %vm36, %v220, 0
    %v227 = vsel %vm40, %v222, 0
    %229 = vmatpush.bf16.msra.mxu0 0
    %230 = vmatpush.bf16.msra.mxu0 0
    %231 = vmatpush.bf16.msra.mxu0 0
    %232 = vmatpush.bf16.msra.mxu0 0
    %233 = vmatpush.bf16.msra.mxu0 0
    %234 = vmatpush.bf16.msra.mxu0 0
    %235 = vmatpush.bf16.msra.mxu0 0
    %236 = vmatpush.bf16.msra.mxu0 %v227
    %237 = vmatmul.bf16.gmra.mxu0 %v224
    %v238 = vpop.f32.mrf.mxu0
    %v239 = vadd.f32 0.0, %v238
    %v240 = vpop.f32.mrf.mxu0
    %241 = vdwg.mxu0
    %242 = vrot.lane.b32.xlu0 %v131, 112
    %v243 = vpop.permute.xlu0 %242
    %244 = vrot.lane.b32.xlu0 %v131, 80
    %v245 = vpop.permute.xlu0 %244
    %v247 = vsel %vm36, %v243, 0
    %v250 = vsel %vm36, %v245, 0
    %252 = vmatpush.bf16.xpose.msra.mxu0 0
    %253 = vmatpush.bf16.xpose.msra.mxu0 0
    %254 = vmatpush.bf16.xpose.msra.mxu0 0
    %255 = vmatpush.bf16.xpose.msra.mxu0 0
    %256 = vmatpush.bf16.xpose.msra.mxu0 0
    %257 = vmatpush.bf16.xpose.msra.mxu0 0
    %258 = vmatpush.bf16.xpose.msra.mxu0 0
    %259 = vmatpush.bf16.xpose.msra.mxu0 %v250
    %260 = vmatmul.bf16.gmra.mxu0 %v247
    %v261 = vpop.f32.mrf.mxu0
    %v262 = vadd.f32 0.0, %v261
    %v263 = vpop.f32.mrf.mxu0
    %264 = vdwg.mxu0
    %v265 = vsel %vm36, %v262, -inf
    %266 = vmax.xlane.f32.xlu0 %v265
    %v267 = vpop.xlane.xlu0 %266
    %v268 = vsub.f32 %v262, %v267
    %v269 = vmul.f32 %v268, 1.442695
    %v270 = vpow.pop %v269
    %v271 = vsel %vm36, %v270, 0.0
    %272 = vadd.xlane.f32.xlu0 %v271
    %v273 = vpop.xlane.xlu0 %272
    %v274 = vrcp.pop %v273
    %v275 = vmul.f32 %v270, %v274
    %v276 = vpack.c.bf16 %v275, %v275
    %277 = vrot.lane.b32.xlu0 %v131, 48
    %v278 = vpop.permute.xlu0 %277
    %v280 = vsel %vm36, %v276, 0
    %v283 = vsel %vm40, %v278, 0
    %285 = vmatpush.bf16.msra.mxu0 0
    %286 = vmatpush.bf16.msra.mxu0 0
    %287 = vmatpush.bf16.msra.mxu0 0
    %288 = vmatpush.bf16.msra.mxu0 0
    %289 = vmatpush.bf16.msra.mxu0 0
    %290 = vmatpush.bf16.msra.mxu0 0
    %291 = vmatpush.bf16.msra.mxu0 0
    %292 = vmatpush.bf16.msra.mxu0 %v283
    %293 = vmatmul.bf16.gmra.mxu0 %v280
    %v294 = vpop.f32.mrf.mxu0
    %v295 = vadd.f32 0.0, %v294
    %v296 = vpop.f32.mrf.mxu0
    %297 = vdwg.mxu0
    %298 = vrot.lane.b32.xlu0 %v131, 104
    %v299 = vpop.permute.xlu0 %298
    %300 = vrot.lane.b32.xlu0 %v131, 72
    %v301 = vpop.permute.xlu0 %300
    %v303 = vsel %vm36, %v299, 0
    %v306 = vsel %vm36, %v301, 0
    %308 = vmatpush.bf16.xpose.msra.mxu0 0
    %309 = vmatpush.bf16.xpose.msra.mxu0 0
    %310 = vmatpush.bf16.xpose.msra.mxu0 0
    %311 = vmatpush.bf16.xpose.msra.mxu0 0
    %312 = vmatpush.bf16.xpose.msra.mxu0 0
    %313 = vmatpush.bf16.xpose.msra.mxu0 0
    %314 = vmatpush.bf16.xpose.msra.mxu0 0
    %315 = vmatpush.bf16.xpose.msra.mxu0 %v306
    %316 = vmatmul.bf16.gmra.mxu0 %v303
    %v317 = vpop.f32.mrf.mxu0
    %v318 = vadd.f32 0.0, %v317
    %v319 = vpop.f32.mrf.mxu0
    %320 = vdwg.mxu0
    %v321 = vsel %vm36, %v318, -inf
    %322 = vmax.xlane.f32.xlu0 %v321
    %v323 = vpop.xlane.xlu0 %322
    %v324 = vsub.f32 %v318, %v323
    %v325 = vmul.f32 %v324, 1.442695
    %v326 = vpow.pop %v325
    %v327 = vsel %vm36, %v326, 0.0
    %328 = vadd.xlane.f32.xlu0 %v327
    %v329 = vpop.xlane.xlu0 %328
    %v330 = vrcp.pop %v329
    %v331 = vmul.f32 %v326, %v330
    %v332 = vpack.c.bf16 %v331, %v331
    %333 = vrot.lane.b32.xlu0 %v131, 40
    %v334 = vpop.permute.xlu0 %333
    %v336 = vsel %vm36, %v332, 0
    %v339 = vsel %vm40, %v334, 0
    %341 = vmatpush.bf16.msra.mxu0 0
    %342 = vmatpush.bf16.msra.mxu0 0
    %343 = vmatpush.bf16.msra.mxu0 0
    %344 = vmatpush.bf16.msra.mxu0 0
    %345 = vmatpush.bf16.msra.mxu0 0
    %346 = vmatpush.bf16.msra.mxu0 0
    %347 = vmatpush.bf16.msra.mxu0 0
    %348 = vmatpush.bf16.msra.mxu0 %v339
    %349 = vmatmul.bf16.gmra.mxu0 %v336
    %v350 = vpop.f32.mrf.mxu0
    %v351 = vadd.f32 0.0, %v350
    %v352 = vpop.f32.mrf.mxu0
    %353 = vdwg.mxu0
    %355 = vrot.lane.b32.xlu0 %v239, 8
    %v356 = vpop.permute.xlu0 %355
    %359 = vrot.lane.b32.xlu0 %v295, 16
    %v360 = vpop.permute.xlu0 %359
    %363 = vrot.lane.b32.xlu0 %v351, 24
    %v364 = vpop.permute.xlu0 %363
    %v366 = vsel %vm36, %v183, %v356
    %vm367 = vcmask 130048
    %v368 = vsel %vm367, %v366, %v360
    %vm369 = vcmask 195584
    %v370 = vsel %vm369, %v368, %v364
    %v371 = vpack.c.bf16 %v370, %v370
    %v372 = vld [vmem:[#allocation2 + $0x18] sm:$0xf]
    %v373 = vld [vmem:[#allocation2 + $0x1c] sm:$0xf]
    %v374 = vld [vmem:[#allocation2 + $0x20] sm:$0xf]
    %v375 = vld [vmem:[#allocation2 + $0x24] sm:$0xf]
    %v376 = vld [vmem:[%s2 + $0x4] sm:$0x1]
    %v377 = vperm.slane %v376, 0
    %v382 = vunpack.c.l.b16 %v372
    %v383 = vunpack.c.l.b16 %v373
    %v384 = vunpack.c.l.b16 %v374
    %v385 = vunpack.c.l.b16 %v375
    %v386 = vpack.c.b16 %v383, %v382
    %v387 = vpack.c.b16 %v385, %v384
    %v391 = vsel %vm57, %v371, 0
    %393 = vmatpush.bf16.msra.mxu0 0
    %394 = vmatpush.bf16.msra.mxu0 0
    %395 = vmatpush.bf16.msra.mxu0 0
    %396 = vmatpush.bf16.msra.mxu0 0
    %397 = vmatpush.bf16.msra.mxu0 0
    %398 = vmatpush.bf16.msra.mxu0 0
    %399 = vmatpush.bf16.msra.mxu0 %v387
    %400 = vmatpush.bf16.msra.mxu0 %v386
    %401 = vmatmul.bf16.gmra.mxu0 %v391
    %v402 = vpop.f32.mrf.mxu0
    %v403 = vadd.f32 %v377, %v402
    %v404 = vpop.f32.mrf.mxu0
    %405 = vdwg.mxu0
    %v406 = vadd.f32 %v92, %v403
    %v407 = vsel %vm57, %v406, 0.0
    %408 = vadd.xlane.f32.xlu0 %v407
    %v409 = vpop.xlane.xlu0 %408
    %v410 = vmul.f32 %v409, %v67
    %v411 = vsub.f32 %v406, %v410
    %v412 = vmul.f32 %v411, %v411
    %v413 = vsel %vm57, %v412, 0.0
    %414 = vadd.xlane.f32.xlu0 %v413
    %v415 = vpop.xlane.xlu0 %414
    %v416 = vmul.f32 %v415, %v67
    %v417 = vadd.f32 %v416, 1e-05
    %v418 = vrsqrt.pop %v417
    %v419 = vmul.f32 %v418, %v417
    %v420 = vmul.f32 %v419, %v418
    %v421 = vmul.f32 0.5, %v420
    %v422 = vsub.f32 1.5, %v421
    %v423 = vmul.f32 %v418, %v422
    %vm424 = vweird.f32 %v417
    %vm425 = vweird.f32 %v418
    %vm426 = vmor %vm424, %vm425
    %v427 = vsel %vm426, %v418, %v423
    %v428 = vmul.f32 %v411, %v427
    %v429 = vld [vmem:[%s2 + $0x7] sm:$0x1]
    %v430 = vperm.slane %v429, 0
    %v431 = vmul.f32 %v428, %v430
    %v432 = vld [vmem:[%s2 + $0x8] sm:$0x1]
    %v433 = vperm.slane %v432, 0
    %v434 = vadd.f32 %v431, %v433
    %v435 = vpack.c.bf16 %v434, %v434
    %v436 = vld [vmem:[#allocation2 + $0x28] sm:$0xf]
    %v437 = vld [vmem:[#allocation2 + $0x2c] sm:$0xf]
    %v438 = vld [vmem:[#allocation2 + $0x30] sm:$0xf]
    %v439 = vld [vmem:[#allocation2 + $0x34] sm:$0xf]
    %v440 = vld [vmem:[%s2 + $0x5] sm:$0x1]
    %v441 = vperm.slane %v440, 0
    %v446 = vunpack.c.l.b16 %v436
    %v447 = vunpack.c.l.b16 %v437
    %v448 = vunpack.c.l.b16 %v438
    %v449 = vunpack.c.l.b16 %v439
    %v450 = vpack.c.b16 %v447, %v446
    %v451 = vpack.c.b16 %v449, %v448
    %v455 = vsel %vm57, %v435, 0
    %457 = vmatpush.bf16.msra.mxu0 0
    %458 = vmatpush.bf16.msra.mxu0 0
    %459 = vmatpush.bf16.msra.mxu0 0
    %460 = vmatpush.bf16.msra.mxu0 0
    %461 = vmatpush.bf16.msra.mxu0 0
    %462 = vmatpush.bf16.msra.mxu0 0
    %463 = vmatpush.bf16.msra.mxu0 %v451
    %464 = vmatpush.bf16.msra.mxu0 %v450
    %465 = vmatmul.bf16.gmra.mxu0 %v455
    %v466 = vpop.f32.mrf.mxu0
    %v467 = vadd.f32 %v441, %v466
    %v468 = vpop.f32.mrf.mxu0
    %469 = vdwg.mxu0
    %v470 = vmax.f32 %v467, 0.0
    %v471 = vpack.c.bf16 %v470, %v470
    %v472 = vld [vmem:[#allocation2 + $0x38] sm:$0xf]
    %v473 = vld [vmem:[#allocation2 + $0x3c] sm:$0xf]
    %v474 = vld [vmem:[#allocation2 + $0x40] sm:$0xf]
    %v475 = vld [vmem:[#allocation2 + $0x44] sm:$0xf]
    %v476 = vld [vmem:[#allocation2 + $0x48] sm:$0xf]
    %v477 = vld [vmem:[#allocation2 + $0x4c] sm:$0xf]
    %v478 = vld [vmem:[#allocation2 + $0x50] sm:$0xf]
    %v479 = vld [vmem:[#allocation2 + $0x54] sm:$0xf]
    %v480 = vld [vmem:[%s2 + $0x6] sm:$0x1]
    %v481 = vperm.slane %v480, 0
    %v490 = vunpack.c.l.b16 %v472
    %v491 = vunpack.c.l.b16 %v473
    %v492 = vunpack.c.l.b16 %v474
    %v493 = vunpack.c.l.b16 %v475
    %v494 = vunpack.c.l.b16 %v476
    %v495 = vunpack.c.l.b16 %v477
    %v496 = vunpack.c.l.b16 %v478
    %v497 = vunpack.c.l.b16 %v479
    %v498 = vpack.c.b16 %v491, %v490
    %v499 = vpack.c.b16 %v493, %v492
    %v500 = vpack.c.b16 %v495, %v494
    %v501 = vpack.c.b16 %v497, %v496
    %vm506 = vcmask 523264
    %v508 = vsel %vm506, %v471, 0
    %510 = vmatpush.bf16.msra.mxu0 0
    %511 = vmatpush.bf16.msra.mxu0 0
    %512 = vmatpush.bf16.msra.mxu0 0
    %513 = vmatpush.bf16.msra.mxu0 0
    %514 = vmatpush.bf16.msra.mxu0 %v501
    %515 = vmatpush.bf16.msra.mxu0 %v500
    %516 = vmatpush.bf16.msra.mxu0 %v499
    %517 = vmatpush.bf16.msra.mxu0 %v498
    %518 = vmatmul.bf16.gmra.mxu0 %v508
    %v519 = vpop.f32.mrf.mxu0
    %v520 = vadd.f32 %v481, %v519
    %v521 = vpop.f32.mrf.mxu0
    %522 = vdwg.mxu0
    %v523 = vadd.f32 %v434, %v520
    %v524 = vsel %vm57, %v523, 0.0
    %525 = vadd.xlane.f32.xlu0 %v524
    %v526 = vpop.xlane.xlu0 %525
    %v527 = vmul.f32 %v526, %v67
    %v528 = vsub.f32 %v523, %v527
    %v529 = vmul.f32 %v528, %v528
    %v530 = vsel %vm57, %v529, 0.0
    %531 = vadd.xlane.f32.xlu0 %v530
    %v532 = vpop.xlane.xlu0 %531
    %v533 = vmul.f32 %v532, %v67
    %v534 = vadd.f32 %v533, 1e-05
    %v535 = vrsqrt.pop %v534
    %v536 = vmul.f32 %v535, %v534
    %v537 = vmul.f32 %v536, %v535
    %v538 = vmul.f32 0.5, %v537
    %v539 = vsub.f32 1.5, %v538
    %v540 = vmul.f32 %v535, %v539
    %vm541 = vweird.f32 %v534
    %vm542 = vweird.f32 %v535
    %vm543 = vmor %vm541, %vm542
    %v544 = vsel %vm543, %v535, %v540
    %v545 = vmul.f32 %v528, %v544
    %v546 = vld [vmem:[%s2 + $0x9] sm:$0x1]
    %v547 = vperm.slane %v546, 0
    %v548 = vmul.f32 %v545, %v547
    %v549 = vld [vmem:[%s2 + $0xa] sm:$0x1]
    %v550 = vperm.slane %v549, 0
    %v551 = vadd.f32 %v548, %v550
    %v552 = vpack.c.bf16 %v551, %v551
    %v553 = vld [vmem:[#allocation2 + $0x58] sm:$0xf]
    %v554 = vld [vmem:[#allocation2 + $0x5c] sm:$0xf]
    %v555 = vld [vmem:[#allocation2 + $0x60] sm:$0xf]
    %v556 = vld [vmem:[#allocation2 + $0x64] sm:$0xf]
    %v557 = vld [vmem:[%s2 + $0xb] sm:$0x1]
    %v558 = vperm.slane %v557, 0
    %v563 = vunpack.c.l.b16 %v553
    %v564 = vunpack.c.l.b16 %v554
    %v565 = vunpack.c.l.b16 %v555
    %v566 = vunpack.c.l.b16 %v556
    %v567 = vpack.c.b16 %v564, %v563
    %v568 = vpack.c.b16 %v566, %v565
    %v572 = vsel %vm57, %v552, 0
    %574 = vmatpush.bf16.msra.mxu0 0
    %575 = vmatpush.bf16.msra.mxu0 0
    %576 = vmatpush.bf16.msra.mxu0 0
    %577 = vmatpush.bf16.msra.mxu0 0
    %578 = vmatpush.bf16.msra.mxu0 0
    %579 = vmatpush.bf16.msra.mxu0 0
    %580 = vmatpush.bf16.msra.mxu0 %v568
    %581 = vmatpush.bf16.msra.mxu0 %v567
    %582 = vmatmul.bf16.gmra.mxu0 %v572
    %v583 = vpop.f32.mrf.mxu0
    %v584 = vadd.f32 %v558, %v583
    %v585 = vpop.f32.mrf.mxu0
    %586 = vdwg.mxu0
    %v587 = vpack.c.bf16 %v584, %v584
    %v589 = vunpack.c.l.b16 %v587
    %v590 = vpack.c.b16 %v589, %v589
    %591 = vrot.lane.b32.xlu0 %v590, 96
    %v592 = vpop.permute.xlu0 %591
    %v594 = vsel %vm36, %v587, 0
    %v597 = vsel %vm36, %v592, 0
    %599 = vmatpush.bf16.xpose.msra.mxu0 0
    %600 = vmatpush.bf16.xpose.msra.mxu0 0
    %601 = vmatpush.bf16.xpose.msra.mxu0 0
    %602 = vmatpush.bf16.xpose.msra.mxu0 0
    %603 = vmatpush.bf16.xpose.msra.mxu0 0
    %604 = vmatpush.bf16.xpose.msra.mxu0 0
    %605 = vmatpush.bf16.xpose.msra.mxu0 0
    %606 = vmatpush.bf16.xpose.msra.mxu0 %v597
    %607 = vmatmul.bf16.gmra.mxu0 %v594
    %v608 = vpop.f32.mrf.mxu0
    %v609 = vadd.f32 0.0, %v608
    %v610 = vpop.f32.mrf.mxu0
    %611 = vdwg.mxu0
    %v612 = vsel %vm36, %v609, -inf
    %613 = vmax.xlane.f32.xlu0 %v612
    %v614 = vpop.xlane.xlu0 %613
    %v615 = vsub.f32 %v609, %v614
    %v616 = vmul.f32 %v615, 1.442695
    %v617 = vpow.pop %v616
    %v618 = vsel %vm36, %v617, 0.0
    %619 = vadd.xlane.f32.xlu0 %v618
    %v620 = vpop.xlane.xlu0 %619
    %v621 = vrcp.pop %v620
    %v622 = vmul.f32 %v617, %v621
    %v623 = vpack.c.bf16 %v622, %v622
    %624 = vrot.lane.b32.xlu0 %v590, 64
    %v625 = vpop.permute.xlu0 %624
    %v627 = vsel %vm36, %v623, 0
    %v630 = vsel %vm40, %v625, 0
    %632 = vmatpush.bf16.msra.mxu0 0
    %633 = vmatpush.bf16.msra.mxu0 0
    %634 = vmatpush.bf16.msra.mxu0 0
    %635 = vmatpush.bf16.msra.mxu0 0
    %636 = vmatpush.bf16.msra.mxu0 0
    %637 = vmatpush.bf16.msra.mxu0 0
    %638 = vmatpush.bf16.msra.mxu0 0
    %639 = vmatpush.bf16.msra.mxu0 %v630
    %640 = vmatmul.bf16.gmra.mxu0 %v627
    %v641 = vpop.f32.mrf.mxu0
    %v642 = vadd.f32 0.0, %v641
    %v643 = vpop.f32.mrf.mxu0
    %644 = vdwg.mxu0
    %645 = vrot.lane.b32.xlu0 %v590, 120
    %v646 = vpop.permute.xlu0 %645
    %647 = vrot.lane.b32.xlu0 %v590, 88
    %v648 = vpop.permute.xlu0 %647
    %v650 = vsel %vm36, %v646, 0
    %v653 = vsel %vm36, %v648, 0
    %655 = vmatpush.bf16.xpose.msra.mxu0 0
    %656 = vmatpush.bf16.xpose.msra.mxu0 0
    %657 = vmatpush.bf16.xpose.msra.mxu0 0
    %658 = vmatpush.bf16.xpose.msra.mxu0 0
    %659 = vmatpush.bf16.xpose.msra.mxu0 0
    %660 = vmatpush.bf16.xpose.msra.mxu0 0
    %661 = vmatpush.bf16.xpose.msra.mxu0 0
    %662 = vmatpush.bf16.xpose.msra.mxu0 %v653
    %663 = vmatmul.bf16.gmra.mxu0 %v650
    %v664 = vpop.f32.mrf.mxu0
    %v665 = vadd.f32 0.0, %v664
    %v666 = vpop.f32.mrf.mxu0
    %667 = vdwg.mxu0
    %v668 = vsel %vm36, %v665, -inf
    %669 = vmax.xlane.f32.xlu0 %v668
    %v670 = vpop.xlane.xlu0 %669
    %v671 = vsub.f32 %v665, %v670
    %v672 = vmul.f32 %v671, 1.442695
    %v673 = vpow.pop %v672
    %v674 = vsel %vm36, %v673, 0.0
    %675 = vadd.xlane.f32.xlu0 %v674
    %v676 = vpop.xlane.xlu0 %675
    %v677 = vrcp.pop %v676
    %v678 = vmul.f32 %v673, %v677
    %v679 = vpack.c.bf16 %v678, %v678
    %680 = vrot.lane.b32.xlu0 %v590, 56
    %v681 = vpop.permute.xlu0 %680
    %v683 = vsel %vm36, %v679, 0
    %v686 = vsel %vm40, %v681, 0
    %688 = vmatpush.bf16.msra.mxu0 0
    %689 = vmatpush.bf16.msra.mxu0 0
    %690 = vmatpush.bf16.msra.mxu0 0
    %691 = vmatpush.bf16.msra.mxu0 0
    %692 = vmatpush.bf16.msra.mxu0 0
    %693 = vmatpush.bf16.msra.mxu0 0
    %694 = vmatpush.bf16.msra.mxu0 0
    %695 = vmatpush.bf16.msra.mxu0 %v686
    %696 = vmatmul.bf16.gmra.mxu0 %v683
    %v697 = vpop.f32.mrf.mxu0
    %v698 = vadd.f32 0.0, %v697
    %v699 = vpop.f32.mrf.mxu0
    %700 = vdwg.mxu0
    %701 = vrot.lane.b32.xlu0 %v590, 112
    %v702 = vpop.permute.xlu0 %701
    %703 = vrot.lane.b32.xlu0 %v590, 80
    %v704 = vpop.permute.xlu0 %703
    %v706 = vsel %vm36, %v702, 0
    %v709 = vsel %vm36, %v704, 0
    %711 = vmatpush.bf16.xpose.msra.mxu0 0
    %712 = vmatpush.bf16.xpose.msra.mxu0 0
    %713 = vmatpush.bf16.xpose.msra.mxu0 0
    %714 = vmatpush.bf16.xpose.msra.mxu0 0
    %715 = vmatpush.bf16.xpose.msra.mxu0 0
    %716 = vmatpush.bf16.xpose.msra.mxu0 0
    %717 = vmatpush.bf16.xpose.msra.mxu0 0
    %718 = vmatpush.bf16.xpose.msra.mxu0 %v709
    %719 = vmatmul.bf16.gmra.mxu0 %v706
    %v720 = vpop.f32.mrf.mxu0
    %v721 = vadd.f32 0.0, %v720
    %v722 = vpop.f32.mrf.mxu0
    %723 = vdwg.mxu0
    %v724 = vsel %vm36, %v721, -inf
    %725 = vmax.xlane.f32.xlu0 %v724
    %v726 = vpop.xlane.xlu0 %725
    %v727 = vsub.f32 %v721, %v726
    %v728 = vmul.f32 %v727, 1.442695
    %v729 = vpow.pop %v728
    %v730 = vsel %vm36, %v729, 0.0
    %731 = vadd.xlane.f32.xlu0 %v730
    %v732 = vpop.xlane.xlu0 %731
    %v733 = vrcp.pop %v732
    %v734 = vmul.f32 %v729, %v733
    %v735 = vpack.c.bf16 %v734, %v734
    %736 = vrot.lane.b32.xlu0 %v590, 48
    %v737 = vpop.permute.xlu0 %736
    %v739 = vsel %vm36, %v735, 0
    %v742 = vsel %vm40, %v737, 0
    %744 = vmatpush.bf16.msra.mxu0 0
    %745 = vmatpush.bf16.msra.mxu0 0
    %746 = vmatpush.bf16.msra.mxu0 0
    %747 = vmatpush.bf16.msra.mxu0 0
    %748 = vmatpush.bf16.msra.mxu0 0
    %749 = vmatpush.bf16.msra.mxu0 0
    %750 = vmatpush.bf16.msra.mxu0 0
    %751 = vmatpush.bf16.msra.mxu0 %v742
    %752 = vmatmul.bf16.gmra.mxu0 %v739
    %v753 = vpop.f32.mrf.mxu0
    %v754 = vadd.f32 0.0, %v753
    %v755 = vpop.f32.mrf.mxu0
    %756 = vdwg.mxu0
    %757 = vrot.lane.b32.xlu0 %v590, 104
    %v758 = vpop.permute.xlu0 %757
    %759 = vrot.lane.b32.xlu0 %v590, 72
    %v760 = vpop.permute.xlu0 %759
    %v762 = vsel %vm36, %v758, 0
    %v765 = vsel %vm36, %v760, 0
    %767 = vmatpush.bf16.xpose.msra.mxu0 0
    %768 = vmatpush.bf16.xpose.msra.mxu0 0
    %769 = vmatpush.bf16.xpose.msra.mxu0 0
    %770 = vmatpush.bf16.xpose.msra.mxu0 0
    %771 = vmatpush.bf16.xpose.msra.mxu0 0
    %772 = vmatpush.bf16.xpose.msra.mxu0 0
    %773 = vmatpush.bf16.xpose.msra.mxu0 0
    %774 = vmatpush.bf16.xpose.msra.mxu0 %v765
    %775 = vmatmul.bf16.gmra.mxu0 %v762
    %v776 = vpop.f32.mrf.mxu0
    %v777 = vadd.f32 0.0, %v776
    %v778 = vpop.f32.mrf.mxu0
    %779 = vdwg.mxu0
    %v780 = vsel %vm36, %v777, -inf
    %781 = vmax.xlane.f32.xlu0 %v780
    %v782 = vpop.xlane.xlu0 %781
    %v783 = vsub.f32 %v777, %v782
    %v784 = vmul.f32 %v783, 1.442695
    %v785 = vpow.pop %v784
    %v786 = vsel %vm36, %v785, 0.0
    %787 = vadd.xlane.f32.xlu0 %v786
    %v788 = vpop.xlane.xlu0 %787
    %v789 = vrcp.pop %v788
    %v790 = vmul.f32 %v785, %v789
    %v791 = vpack.c.bf16 %v790, %v790
    %792 = vrot.lane.b32.xlu0 %v590, 40
    %v793 = vpop.permute.xlu0 %792
    %v795 = vsel %vm36, %v791, 0
    %v798 = vsel %vm40, %v793, 0
    %800 = vmatpush.bf16.msra.mxu0 0
    %801 = vmatpush.bf16.msra.mxu0 0
    %802 = vmatpush.bf16.msra.mxu0 0
    %803 = vmatpush.bf16.msra.mxu0 0
    %804 = vmatpush.bf16.msra.mxu0 0
    %805 = vmatpush.bf16.msra.mxu0 0
    %806 = vmatpush.bf16.msra.mxu0 0
    %807 = vmatpush.bf16.msra.mxu0 %v798
    %808 = vmatmul.bf16.gmra.mxu0 %v795
    %v809 = vpop.f32.mrf.mxu0
    %v810 = vadd.f32 0.0, %v809
    %v811 = vpop.f32.mrf.mxu0
    %812 = vdwg.mxu0
    %814 = vrot.lane.b32.xlu0 %v698, 8
    %v815 = vpop.permute.xlu0 %814
    %818 = vrot.lane.b32.xlu0 %v754, 16
    %v819 = vpop.permute.xlu0 %818
    %822 = vrot.lane.b32.xlu0 %v810, 24
    %v823 = vpop.permute.xlu0 %822
    %v825 = vsel %vm36, %v642, %v815
    %v826 = vsel %vm367, %v825, %v819
    %v827 = vsel %vm369, %v826, %v823
    %v828 = vpack.c.bf16 %v827, %v827
    %v829 = vld [vmem:[#allocation2 + $0x68] sm:$0xf]
    %v830 = vld [vmem:[#allocation2 + $0x6c] sm:$0xf]
    %v831 = vld [vmem:[#allocation2 + $0x70] sm:$0xf]
    %v832 = vld [vmem:[#allocation2 + $0x74] sm:$0xf]
    %v833 = vld [vmem:[%s2 + $0xc] sm:$0x1]
    %v834 = vperm.slane %v833, 0
    %v839 = vunpack.c.l.b16 %v829
    %v840 = vunpack.c.l.b16 %v830
    %v841 = vunpack.c.l.b16 %v831
    %v842 = vunpack.c.l.b16 %v832
    %v843 = vpack.c.b16 %v840, %v839
    %v844 = vpack.c.b16 %v842, %v841
    %v848 = vsel %vm57, %v828, 0
    %850 = vmatpush.bf16.msra.mxu0 0
    %851 = vmatpush.bf16.msra.mxu0 0
    %852 = vmatpush.bf16.msra.mxu0 0
    %853 = vmatpush.bf16.msra.mxu0 0
    %854 = vmatpush.bf16.msra.mxu0 0
    %855 = vmatpush.bf16.msra.mxu0 0
    %856 = vmatpush.bf16.msra.mxu0 %v844
    %857 = vmatpush.bf16.msra.mxu0 %v843
    %858 = vmatmul.bf16.gmra.mxu0 %v848
    %v859 = vpop.f32.mrf.mxu0
    %v860 = vadd.f32 %v834, %v859
    %v861 = vpop.f32.mrf.mxu0
    %862 = vdwg.mxu0
    %v863 = vadd.f32 %v551, %v860
    %v864 = vsel %vm57, %v863, 0.0
    %865 = vadd.xlane.f32.xlu0 %v864
    %v866 = vpop.xlane.xlu0 %865
    %v867 = vmul.f32 %v866, %v67
    %v868 = vsub.f32 %v863, %v867
    %v869 = vmul.f32 %v868, %v868
    %v870 = vsel %vm57, %v869, 0.0
    %871 = vadd.xlane.f32.xlu0 %v870
    %v872 = vpop.xlane.xlu0 %871
    %v873 = vmul.f32 %v872, %v67
    %v874 = vadd.f32 %v873, 1e-05
    %v875 = vrsqrt.pop %v874
    %v876 = vmul.f32 %v875, %v874
    %v877 = vmul.f32 %v876, %v875
    %v878 = vmul.f32 0.5, %v877
    %v879 = vsub.f32 1.5, %v878
    %v880 = vmul.f32 %v875, %v879
    %vm881 = vweird.f32 %v874
    %vm882 = vweird.f32 %v875
    %vm883 = vmor %vm881, %vm882
    %v884 = vsel %vm883, %v875, %v880
    %v885 = vmul.f32 %v868, %v884
    %v886 = vld [vmem:[%s2 + $0xf] sm:$0x1]
    %v887 = vperm.slane %v886, 0
    %v888 = vmul.f32 %v885, %v887
    %v889 = vld [vmem:[%s2 + $0x10] sm:$0x1]
    %v890 = vperm.slane %v889, 0
    %v891 = vadd.f32 %v888, %v890
    %v892 = vpack.c.bf16 %v891, %v891
    %v893 = vld [vmem:[#allocation2 + $0x78] sm:$0xf]
    %v894 = vld [vmem:[#allocation2 + $0x7c] sm:$0xf]
    %v895 = vld [vmem:[#allocation2 + $0x80] sm:$0xf]
    %v896 = vld [vmem:[#allocation2 + $0x84] sm:$0xf]
    %v897 = vld [vmem:[%s2 + $0xd] sm:$0x1]
    %v898 = vperm.slane %v897, 0
    %v903 = vunpack.c.l.b16 %v893
    %v904 = vunpack.c.l.b16 %v894
    %v905 = vunpack.c.l.b16 %v895
    %v906 = vunpack.c.l.b16 %v896
    %v907 = vpack.c.b16 %v904, %v903
    %v908 = vpack.c.b16 %v906, %v905
    %v912 = vsel %vm57, %v892, 0
    %914 = vmatpush.bf16.msra.mxu0 0
    %915 = vmatpush.bf16.msra.mxu0 0
    %916 = vmatpush.bf16.msra.mxu0 0
    %917 = vmatpush.bf16.msra.mxu0 0
    %918 = vmatpush.bf16.msra.mxu0 0
    %919 = vmatpush.bf16.msra.mxu0 0
    %920 = vmatpush.bf16.msra.mxu0 %v908
    %921 = vmatpush.bf16.msra.mxu0 %v907
    %922 = vmatmul.bf16.gmra.mxu0 %v912
    %v923 = vpop.f32.mrf.mxu0
    %v924 = vadd.f32 %v898, %v923
    %v925 = vpop.f32.mrf.mxu0
    %926 = vdwg.mxu0
    %v927 = vmax.f32 %v924, 0.0
    %v928 = vpack.c.bf16 %v927, %v927
    %v929 = vld [vmem:[#allocation2 + $0x88] sm:$0xf]
    %v930 = vld [vmem:[#allocation2 + $0x8c] sm:$0xf]
    %v931 = vld [vmem:[#allocation2 + $0x90] sm:$0xf]
    %v932 = vld [vmem:[#allocation2 + $0x94] sm:$0xf]
    %v933 = vld [vmem:[#allocation2 + $0x98] sm:$0xf]
    %v934 = vld [vmem:[#allocation2 + $0x9c] sm:$0xf]
    %v935 = vld [vmem:[#allocation2 + $0xa0] sm:$0xf]
    %v936 = vld [vmem:[#allocation2 + $0xa4] sm:$0xf]
    %v937 = vld [vmem:[%s2 + $0xe] sm:$0x1]
    %v938 = vperm.slane %v937, 0
    %v947 = vunpack.c.l.b16 %v929
    %v948 = vunpack.c.l.b16 %v930
    %v949 = vunpack.c.l.b16 %v931
    %v950 = vunpack.c.l.b16 %v932
    %v951 = vunpack.c.l.b16 %v933
    %v952 = vunpack.c.l.b16 %v934
    %v953 = vunpack.c.l.b16 %v935
    %v954 = vunpack.c.l.b16 %v936
    %v955 = vpack.c.b16 %v948, %v947
    %v956 = vpack.c.b16 %v950, %v949
    %v957 = vpack.c.b16 %v952, %v951
    %v958 = vpack.c.b16 %v954, %v953
    %v964 = vsel %vm506, %v928, 0
    %966 = vmatpush.bf16.msra.mxu0 0
    %967 = vmatpush.bf16.msra.mxu0 0
    %968 = vmatpush.bf16.msra.mxu0 0
    %969 = vmatpush.bf16.msra.mxu0 0
    %970 = vmatpush.bf16.msra.mxu0 %v958
    %971 = vmatpush.bf16.msra.mxu0 %v957
    %972 = vmatpush.bf16.msra.mxu0 %v956
    %973 = vmatpush.bf16.msra.mxu0 %v955
    %974 = vmatmul.bf16.gmra.mxu0 %v964
    %v975 = vpop.f32.mrf.mxu0
    %v976 = vadd.f32 %v938, %v975
    %v977 = vpop.f32.mrf.mxu0
    %978 = vdwg.mxu0
    %v979 = vadd.f32 %v891, %v976
    %v980 = vsel %vm57, %v979, 0.0
    %981 = vadd.xlane.f32.xlu0 %v980
    %v982 = vpop.xlane.xlu0 %981
    %v983 = vmul.f32 %v982, %v67
    %v984 = vsub.f32 %v979, %v983
    %v985 = vmul.f32 %v984, %v984
    %v986 = vsel %vm57, %v985, 0.0
    %987 = vadd.xlane.f32.xlu0 %v986
    %v988 = vpop.xlane.xlu0 %987
    %v989 = vmul.f32 %v988, %v67
    %v990 = vadd.f32 %v989, 1e-05
    %v991 = vrsqrt.pop %v990
    %v992 = vmul.f32 %v991, %v990
    %v993 = vmul.f32 %v992, %v991
    %v994 = vmul.f32 0.5, %v993
    %v995 = vsub.f32 1.5, %v994
    %v996 = vmul.f32 %v991, %v995
    %vm997 = vweird.f32 %v990
    %vm998 = vweird.f32 %v991
    %vm999 = vmor %vm997, %vm998
    %v1000 = vsel %vm999, %v991, %v996
    %v1001 = vmul.f32 %v984, %v1000
    %v1002 = vld [vmem:[%s2 + $0x11] sm:$0x1]
    %v1003 = vperm.slane %v1002, 0
    %v1004 = vmul.f32 %v1001, %v1003
    %v1005 = vld [vmem:[%s2 + $0x12] sm:$0x1]
    %v1006 = vperm.slane %v1005, 0
    %v1007 = vadd.f32 %v1004, %v1006
    %v1008 = vpack.c.bf16 %v1007, %v1007
    %v1009 = vld [vmem:[#allocation2 + $0xa8] sm:$0xf]
    %v1010 = vld [vmem:[#allocation2 + $0xac] sm:$0xf]
    %v1011 = vld [vmem:[#allocation2 + $0xb0] sm:$0xf]
    %v1012 = vld [vmem:[#allocation2 + $0xb4] sm:$0xf]
    %v1013 = vld [vmem:[%s2 + $0x13] sm:$0x1]
    %v1014 = vperm.slane %v1013, 0
    %v1019 = vunpack.c.l.b16 %v1009
    %v1020 = vunpack.c.l.b16 %v1010
    %v1021 = vunpack.c.l.b16 %v1011
    %v1022 = vunpack.c.l.b16 %v1012
    %v1023 = vpack.c.b16 %v1020, %v1019
    %v1024 = vpack.c.b16 %v1022, %v1021
    %v1028 = vsel %vm57, %v1008, 0
    %1030 = vmatpush.bf16.msra.mxu0 0
    %1031 = vmatpush.bf16.msra.mxu0 0
    %1032 = vmatpush.bf16.msra.mxu0 0
    %1033 = vmatpush.bf16.msra.mxu0 0
    %1034 = vmatpush.bf16.msra.mxu0 0
    %1035 = vmatpush.bf16.msra.mxu0 0
    %1036 = vmatpush.bf16.msra.mxu0 %v1024
    %1037 = vmatpush.bf16.msra.mxu0 %v1023
    %1038 = vmatmul.bf16.gmra.mxu0 %v1028
    %v1039 = vpop.f32.mrf.mxu0
    %v1040 = vadd.f32 %v1014, %v1039
    %v1041 = vpop.f32.mrf.mxu0
    %1042 = vdwg.mxu0
    %v1043 = vlaneseq
    %v1044 = vand.u32 %v1043, 127
    %vm1045 = vcmp.lt.s32.totalorder %v1044, 10
    %v1046 = vsel %vm1045, %v1040, -1e+30
    %1047 = vmax.xlane.f32.xlu0 %v1046
    %v1048 = vpop.xlane.xlu0 %1047
    %v1049 = vsub.f32 %v1046, %v1048
    %v1050 = vmul.f32 %v1049, 1.442695
    %v1051 = vpow.pop %v1050
    %1052 = vadd.xlane.f32.xlu0 %v1051
    %v1053 = vpop.xlane.xlu0 %1052
    %v1054 = vrcp.pop %v1053
    %v1055 = vmul.f32 %v1053, %v1054
    %v1056 = vsub.f32 1.0, %v1055
    %v1057 = vmul.f32 %v1054, %v1056
    %v1058 = vadd.f32 %v1054, %v1057
    %vm1059 = vweird.f32 %v1053
    %vm1060 = vweird.f32 %v1054
    %vm1061 = vmor %vm1059, %vm1060
    %v1062 = vsel %vm1061, %v1054, %v1058
    %v1063 = vand.u32 2147483647, %v1053
    %vm1064 = vcmp.eq.f32.partialorder %v1063, 8.507059e+37
    %v1065 = vand.u32 %v1053, 2147483648
    %v1066 = vor.u32 1.1754944e-38, %v1065
    %v1067 = vsel %vm1064, %v1066, %v1062
    %v1068 = vmul.f32 %v1051, %v1067
    %v1069 = vxor.u32 %v1040, 2147483648
    %v1070 = vmul.f32 %v1069, 1.442695
    %v1071 = vpow.pop %v1070
    %v1072 = vadd.f32 %v1071, 1.0
    %v1073 = vrcp.pop %v1072
    %v1074 = vmul.f32 %v1072, %v1073
    %v1075 = vsub.f32 1.0, %v1074
    %v1076 = vmul.f32 %v1073, %v1075
    %v1077 = vadd.f32 %v1073, %v1076
    %vm1078 = vweird.f32 %v1072
    %vm1079 = vweird.f32 %v1073
    %vm1080 = vmor %vm1078, %vm1079
    %v1081 = vsel %vm1080, %v1073, %v1077
    %v1082 = vand.u32 2147483647, %v1072
    %vm1083 = vcmp.eq.f32.partialorder %v1082, 8.507059e+37
    %v1084 = vand.u32 %v1072, 2147483648
    %v1085 = vor.u32 1.1754944e-38, %v1084
    %v1086 = vsel %vm1083, %v1085, %v1081
    %v1087 = vmul.f32 1.0, %v1086
    %v1088 = vsel %vm1045, %v1068, %v1087
    %1089 = vst [vmem:[%s3] sm:$0xff] %v1088
    // Predicated region
    $region18: #{gated_transformer_forward.1} parent=1 // pred_check
      _
    $region19: #{gated_transformer_forward.1} parent=1 // pred_check_branch
      %1091 = sbr.rel (0) target = $region21
    $region20: #{gated_transformer_forward.1} parent=1 // pred_region
      _
    $region21: #{gated_transformer_forward.1} parent=1 // pred_fallthru
      _
    // Predicated region
    $region22: #{gated_transformer_forward.1} parent=1 // pred_check
      _
    $region23: #{gated_transformer_forward.1} parent=1 // pred_check_branch
      %1093 = sbr.rel (0) target = $region25
    $region24: #{gated_transformer_forward.1} parent=1 // pred_region
      _
    $region25: #{gated_transformer_forward.1} parent=1 // pred_fallthru
      _
    %1094 = vsyncpa [#allocation3], 1

</llo_original>
